<compile_context>
chip_gen: v6e
topology: v6e:2x2x1
jax: 0.10.0
libtpu: 0.0.40
codegen_flags: <defaults>
</compile_context>

<pallas_src>
import math

import jax
import jax.numpy as jnp
from jax.experimental import pallas as pl
from jax.experimental.pallas import tpu as pltpu

# ---- model dims (small, consistent with a DeiT block) ----
B = 2           # batch
N = 8           # tokens (sequence length)
D = 32          # embed dim
H = 4           # attention heads
DH = D // H     # head dim
G = B * H       # fused (head, batch) groups
MLP_H = 4 * D   # mlp hidden dim
EPS = 1e-6      # DeiT uses LayerNorm(eps=1e-6)
SCALE = DH ** -0.5


def _layernorm_fused(x, gamma, beta):
    # Single-pass statistics: var = E[x^2] - mu^2 (one cross-lane reduction
    # pair instead of two dependent passes).
    inv_d = 1.0 / x.shape[-1]
    s1 = jnp.sum(x, axis=-1, keepdims=True)
    s2 = jnp.sum(x * x, axis=-1, keepdims=True)
    mu = s1 * inv_d
    var = s2 * inv_d - mu * mu
    return (x - mu) * jax.lax.rsqrt(var + EPS) * gamma + beta


def _gelu_exact(x):
    # torch.nn.GELU default: exact erf formulation (kept for semantic fidelity).
    return 0.5 * x * (1.0 + jax.lax.erf(x * (1.0 / math.sqrt(2.0))))


def block_kernel(x_ref,
                 g1_ref, be1_ref,
                 wqkv_ref, bqkv_ref,
                 wproj_ref, bproj_ref,
                 g2_ref, be2_ref,
                 w1_ref, b1_ref,
                 w2_ref, b2_ref,
                 o_ref):
    x = x_ref[...]                                                # (B*N, D)

    # ---------------- Attention branch ----------------
    y = _layernorm_fused(x, g1_ref[...], be1_ref[...])
    qkv = jnp.dot(y, wqkv_ref[...],
                  preferred_element_type=jnp.float32) + bqkv_ref[...]   # (B*N, 3D)

    # Pack q/k/v into one (G, N, DH) batch with group index g = h*B + b.
    # All slices are tile-aligned (row offsets multiples of 8); the stack is a
    # leading-axis concat, so no cross-tile relayout is needed.
    def heads(base):
        return jnp.stack(
            [qkv[b * N:(b + 1) * N, base + h * DH: base + (h + 1) * DH]
             for h in range(H) for b in range(B)],
            axis=0)                                               # (G, N, DH)

    q3 = heads(0) * SCALE
    k3 = heads(D)
    v3 = heads(2 * D)

    # One batched score matmul, ONE softmax, one batched PV matmul covering
    # every (batch, head) group (replaces the per-batch / per-head loops).
    s = jnp.einsum("gnd,gmd->gnm", q3, k3,
                   preferred_element_type=jnp.float32)            # (G, N, N)
    s = s - jnp.max(s, axis=-1, keepdims=True)
    p = jnp.exp(s)
    p = p / jnp.sum(p, axis=-1, keepdims=True)
    o3 = jnp.einsum("gnm,gmd->gnd", p, v3,
                    preferred_element_type=jnp.float32)           # (G, N, DH)

    # Re-assemble (B*N, D): lane-concat heads per batch, then stack batches.
    attn = jnp.concatenate(
        [jnp.concatenate([o3[h * B + b] for h in range(H)], axis=-1)
         for b in range(B)],
        axis=0)                                                   # (B*N, D)
    attn = jnp.dot(attn, wproj_ref[...],
                   preferred_element_type=jnp.float32) + bproj_ref[...]
    x = x + attn

    # ---------------- MLP branch ----------------
    y2 = _layernorm_fused(x, g2_ref[...], be2_ref[...])
    h1 = jnp.dot(y2, w1_ref[...],
                 preferred_element_type=jnp.float32) + b1_ref[...]      # (B*N, 4D)
    h1 = _gelu_exact(h1)
    mlp = jnp.dot(h1, w2_ref[...],
                  preferred_element_type=jnp.float32) + b2_ref[...]     # (B*N, D)

    # Single full-block store.
    o_ref[...] = x + mlp


def block_bf_pallas(x, params):
    # Wrapper-side flatten: kernel sees one 2-D (B*N, D) slab, no grid,
    # no per-batch indexing, weights resident in VMEM for the whole call.
    x2 = x.reshape(B * N, D)
    vmem = pl.BlockSpec(memory_space=pltpu.MemorySpace.VMEM)
    out2 = pl.pallas_call(
        block_kernel,
        out_shape=jax.ShapeDtypeStruct((B * N, D), jnp.float32),
        in_specs=[vmem] * (1 + len(params)),
        out_specs=vmem,
    )(x2, *params)
    return out2.reshape(B, N, D)


# ---------------- reference (pure JAX) for sanity check ----------------
def _layernorm_ref(x, gamma, beta):
    mu = jnp.mean(x, axis=-1, keepdims=True)
    var = jnp.mean((x - mu) ** 2, axis=-1, keepdims=True)
    return (x - mu) * jax.lax.rsqrt(var + EPS) * gamma + beta


def block_bf_ref(x, params):
    (g1, be1, wqkv, bqkv, wproj, bproj, g2, be2, w1, b1, w2, b2) = params
    y = _layernorm_ref(x, g1, be1)
    qkv = y @ wqkv + bqkv                                # (B, N, 3D)
    qkv = qkv.reshape(B, N, 3, H, DH).transpose(2, 0, 3, 1, 4)
    q, k, v = qkv[0], qkv[1], qkv[2]                     # (B, H, N, DH)
    s = jnp.einsum("bhnd,bhmd->bhnm", q * SCALE, k)
    p = jax.nn.softmax(s, axis=-1)
    o = jnp.einsum("bhnm,bhmd->bhnd", p, v)
    o = o.transpose(0, 2, 1, 3).reshape(B, N, D)
    x = x + (o @ wproj + bproj)
    y2 = _layernorm_ref(x, g2, be2)
    h1 = _gelu_exact(y2 @ w1 + b1)
    return x + (h1 @ w2 + b2)


def make_params(key):
    ks = jax.random.split(key, 8)
    std = 0.02
    g1 = jnp.ones((1, D), jnp.float32)
    be1 = jnp.zeros((1, D), jnp.float32)
    wqkv = std * jax.random.normal(ks[0], (D, 3 * D), jnp.float32)
    bqkv = std * jax.random.normal(ks[1], (1, 3 * D), jnp.float32)
    wproj = std * jax.random.normal(ks[2], (D, D), jnp.float32)
    bproj = std * jax.random.normal(ks[3], (1, D), jnp.float32)
    g2 = jnp.ones((1, D), jnp.float32)
    be2 = jnp.zeros((1, D), jnp.float32)
    w1 = std * jax.random.normal(ks[4], (D, MLP_H), jnp.float32)
    b1 = std * jax.random.normal(ks[5], (1, MLP_H), jnp.float32)
    w2 = std * jax.random.normal(ks[6], (MLP_H, D), jnp.float32)
    b2 = std * jax.random.normal(ks[7], (1, D), jnp.float32)
    return (g1, be1, wqkv, bqkv, wproj, bproj, g2, be2, w1, b1, w2, b2)


if __name__ == "__main__":
    key = jax.random.PRNGKey(0)
    kx, kp = jax.random.split(key)
    x = jax.random.normal(kx, (B, N, D), jnp.float32)
    params = make_params(kp)

    out = jax.block_until_ready(block_bf_pallas(x, params))
    ref = jax.block_until_ready(block_bf_ref(x, params))

    assert out.shape == (B, N, D)
    assert jnp.max(jnp.abs(out - ref)) < 1e-4, "mismatch vs pure-JAX reference"
    print("KERNEL_OK")
</pallas_src>

<mosaic_0001>
module attributes {stable_mosaic.version = 11 : i64} {
  func.func @block_kernel(%arg0: memref<16x32xf32, #tpu.memory_space<vmem>>, %arg1: memref<1x32xf32, #tpu.memory_space<vmem>>, %arg2: memref<1x32xf32, #tpu.memory_space<vmem>>, %arg3: memref<32x96xf32, #tpu.memory_space<vmem>>, %arg4: memref<1x96xf32, #tpu.memory_space<vmem>>, %arg5: memref<32x32xf32, #tpu.memory_space<vmem>>, %arg6: memref<1x32xf32, #tpu.memory_space<vmem>>, %arg7: memref<1x32xf32, #tpu.memory_space<vmem>>, %arg8: memref<1x32xf32, #tpu.memory_space<vmem>>, %arg9: memref<32x128xf32, #tpu.memory_space<vmem>>, %arg10: memref<1x128xf32, #tpu.memory_space<vmem>>, %arg11: memref<128x32xf32, #tpu.memory_space<vmem>>, %arg12: memref<1x32xf32, #tpu.memory_space<vmem>>, %arg13: memref<16x32xf32, #tpu.memory_space<vmem>>) attributes {dimension_semantics = [], scalar_prefetch = 0 : i64, scratch_operands = 0 : i64, tpu.core_type = #tpu.core_type<tc>} {
    %c0 = arith.constant 0 : index
    %c0_0 = arith.constant 0 : index
    %0 = vector.load %arg0[%c0, %c0_0] : memref<16x32xf32, #tpu.memory_space<vmem>>, vector<16x32xf32>
    %c0_1 = arith.constant 0 : index
    %c0_2 = arith.constant 0 : index
    %1 = vector.load %arg1[%c0_1, %c0_2] : memref<1x32xf32, #tpu.memory_space<vmem>>, vector<1x32xf32>
    %c0_3 = arith.constant 0 : index
    %c0_4 = arith.constant 0 : index
    %2 = vector.load %arg2[%c0_3, %c0_4] : memref<1x32xf32, #tpu.memory_space<vmem>>, vector<1x32xf32>
    %cst = arith.constant dense<0.000000e+00> : vector<16xf32>
    %3 = vector.multi_reduction <add>, %0, %cst [1] : vector<16x32xf32> to vector<16xf32>
    %4 = vector.shape_cast %3 : vector<16xf32> to vector<16x1xf32>
    %5 = arith.mulf %0, %0 : vector<16x32xf32>
    %cst_5 = arith.constant dense<0.000000e+00> : vector<16xf32>
    %6 = vector.multi_reduction <add>, %5, %cst_5 [1] : vector<16x32xf32> to vector<16xf32>
    %7 = vector.shape_cast %6 : vector<16xf32> to vector<16x1xf32>
    %cst_6 = arith.constant 3.125000e-02 : f32
    %8 = vector.broadcast %cst_6 : f32 to vector<16x1xf32>
    %9 = arith.mulf %4, %8 : vector<16x1xf32>
    %cst_7 = arith.constant 3.125000e-02 : f32
    %10 = vector.broadcast %cst_7 : f32 to vector<16x1xf32>
    %11 = arith.mulf %7, %10 : vector<16x1xf32>
    %12 = arith.mulf %9, %9 : vector<16x1xf32>
    %13 = arith.subf %11, %12 : vector<16x1xf32>
    %14 = vector.broadcast %9 : vector<16x1xf32> to vector<16x32xf32>
    %15 = arith.subf %0, %14 : vector<16x32xf32>
    %cst_8 = arith.constant 9.99999997E-7 : f32
    %16 = vector.broadcast %cst_8 : f32 to vector<16x1xf32>
    %17 = arith.addf %13, %16 : vector<16x1xf32>
    %18 = math.rsqrt %17 : vector<16x1xf32>
    %19 = vector.broadcast %18 : vector<16x1xf32> to vector<16x32xf32>
    %20 = arith.mulf %15, %19 : vector<16x32xf32>
    %21 = vector.broadcast %1 : vector<1x32xf32> to vector<16x32xf32>
    %22 = arith.mulf %20, %21 : vector<16x32xf32>
    %23 = vector.broadcast %2 : vector<1x32xf32> to vector<16x32xf32>
    %24 = arith.addf %22, %23 : vector<16x32xf32>
    %c0_9 = arith.constant 0 : index
    %c0_10 = arith.constant 0 : index
    %25 = vector.load %arg3[%c0_9, %c0_10] : memref<32x96xf32, #tpu.memory_space<vmem>>, vector<32x96xf32>
    %cst_11 = arith.constant dense<0.000000e+00> : vector<16x96xf32>
    %26 = tpu.matmul %24, %25, %cst_11 {dimension_numbers = #tpu.dot_dimension_numbers<[1], [0], [0], [1], [0, 0, 1, 1], [], []>} : vector<16x32xf32>, vector<32x96xf32>, vector<16x96xf32> -> vector<16x96xf32>
    %c0_12 = arith.constant 0 : index
    %c0_13 = arith.constant 0 : index
    %27 = vector.load %arg4[%c0_12, %c0_13] : memref<1x96xf32, #tpu.memory_space<vmem>>, vector<1x96xf32>
    %28 = vector.broadcast %27 : vector<1x96xf32> to vector<16x96xf32>
    %29 = arith.addf %26, %28 : vector<16x96xf32>
    %30 = vector.extract_strided_slice %29 {offsets = [0, 0], sizes = [8, 8], strides = [1, 1]} : vector<16x96xf32> to vector<8x8xf32>
    %31 = vector.extract_strided_slice %29 {offsets = [8, 0], sizes = [8, 8], strides = [1, 1]} : vector<16x96xf32> to vector<8x8xf32>
    %32 = vector.extract_strided_slice %29 {offsets = [0, 8], sizes = [8, 8], strides = [1, 1]} : vector<16x96xf32> to vector<8x8xf32>
    %33 = vector.extract_strided_slice %29 {offsets = [8, 8], sizes = [8, 8], strides = [1, 1]} : vector<16x96xf32> to vector<8x8xf32>
    %34 = vector.extract_strided_slice %29 {offsets = [0, 16], sizes = [8, 8], strides = [1, 1]} : vector<16x96xf32> to vector<8x8xf32>
    %35 = vector.extract_strided_slice %29 {offsets = [8, 16], sizes = [8, 8], strides = [1, 1]} : vector<16x96xf32> to vector<8x8xf32>
    %36 = vector.extract_strided_slice %29 {offsets = [0, 24], sizes = [8, 8], strides = [1, 1]} : vector<16x96xf32> to vector<8x8xf32>
    %37 = vector.extract_strided_slice %29 {offsets = [8, 24], sizes = [8, 8], strides = [1, 1]} : vector<16x96xf32> to vector<8x8xf32>
    %38 = vector.shape_cast %30 : vector<8x8xf32> to vector<1x8x8xf32>
    %39 = vector.shape_cast %31 : vector<8x8xf32> to vector<1x8x8xf32>
    %40 = vector.shape_cast %32 : vector<8x8xf32> to vector<1x8x8xf32>
    %41 = vector.shape_cast %33 : vector<8x8xf32> to vector<1x8x8xf32>
    %42 = vector.shape_cast %34 : vector<8x8xf32> to vector<1x8x8xf32>
    %43 = vector.shape_cast %35 : vector<8x8xf32> to vector<1x8x8xf32>
    %44 = vector.shape_cast %36 : vector<8x8xf32> to vector<1x8x8xf32>
    %45 = vector.shape_cast %37 : vector<8x8xf32> to vector<1x8x8xf32>
    %46 = tpu.concatenate %38, %39, %40, %41, %42, %43, %44, %45 in 0 : vector<1x8x8xf32>, vector<1x8x8xf32>, vector<1x8x8xf32>, vector<1x8x8xf32>, vector<1x8x8xf32>, vector<1x8x8xf32>, vector<1x8x8xf32>, vector<1x8x8xf32> -> vector<8x8x8xf32>
    %cst_14 = arith.constant 0.353553385 : f32
    %47 = vector.broadcast %cst_14 : f32 to vector<8x8x8xf32>
    %48 = arith.mulf %46, %47 : vector<8x8x8xf32>
    %49 = vector.extract_strided_slice %29 {offsets = [0, 32], sizes = [8, 8], strides = [1, 1]} : vector<16x96xf32> to vector<8x8xf32>
    %50 = vector.extract_strided_slice %29 {offsets = [8, 32], sizes = [8, 8], strides = [1, 1]} : vector<16x96xf32> to vector<8x8xf32>
    %51 = vector.extract_strided_slice %29 {offsets = [0, 40], sizes = [8, 8], strides = [1, 1]} : vector<16x96xf32> to vector<8x8xf32>
    %52 = vector.extract_strided_slice %29 {offsets = [8, 40], sizes = [8, 8], strides = [1, 1]} : vector<16x96xf32> to vector<8x8xf32>
    %53 = vector.extract_strided_slice %29 {offsets = [0, 48], sizes = [8, 8], strides = [1, 1]} : vector<16x96xf32> to vector<8x8xf32>
    %54 = vector.extract_strided_slice %29 {offsets = [8, 48], sizes = [8, 8], strides = [1, 1]} : vector<16x96xf32> to vector<8x8xf32>
    %55 = vector.extract_strided_slice %29 {offsets = [0, 56], sizes = [8, 8], strides = [1, 1]} : vector<16x96xf32> to vector<8x8xf32>
    %56 = vector.extract_strided_slice %29 {offsets = [8, 56], sizes = [8, 8], strides = [1, 1]} : vector<16x96xf32> to vector<8x8xf32>
    %57 = vector.shape_cast %49 : vector<8x8xf32> to vector<1x8x8xf32>
    %58 = vector.shape_cast %50 : vector<8x8xf32> to vector<1x8x8xf32>
    %59 = vector.shape_cast %51 : vector<8x8xf32> to vector<1x8x8xf32>
    %60 = vector.shape_cast %52 : vector<8x8xf32> to vector<1x8x8xf32>
    %61 = vector.shape_cast %53 : vector<8x8xf32> to vector<1x8x8xf32>
    %62 = vector.shape_cast %54 : vector<8x8xf32> to vector<1x8x8xf32>
    %63 = vector.shape_cast %55 : vector<8x8xf32> to vector<1x8x8xf32>
    %64 = vector.shape_cast %56 : vector<8x8xf32> to vector<1x8x8xf32>
    %65 = tpu.concatenate %57, %58, %59, %60, %61, %62, %63, %64 in 0 : vector<1x8x8xf32>, vector<1x8x8xf32>, vector<1x8x8xf32>, vector<1x8x8xf32>, vector<1x8x8xf32>, vector<1x8x8xf32>, vector<1x8x8xf32>, vector<1x8x8xf32> -> vector<8x8x8xf32>
    %66 = vector.extract_strided_slice %29 {offsets = [0, 64], sizes = [8, 8], strides = [1, 1]} : vector<16x96xf32> to vector<8x8xf32>
    %67 = vector.extract_strided_slice %29 {offsets = [8, 64], sizes = [8, 8], strides = [1, 1]} : vector<16x96xf32> to vector<8x8xf32>
    %68 = vector.extract_strided_slice %29 {offsets = [0, 72], sizes = [8, 8], strides = [1, 1]} : vector<16x96xf32> to vector<8x8xf32>
    %69 = vector.extract_strided_slice %29 {offsets = [8, 72], sizes = [8, 8], strides = [1, 1]} : vector<16x96xf32> to vector<8x8xf32>
    %70 = vector.extract_strided_slice %29 {offsets = [0, 80], sizes = [8, 8], strides = [1, 1]} : vector<16x96xf32> to vector<8x8xf32>
    %71 = vector.extract_strided_slice %29 {offsets = [8, 80], sizes = [8, 8], strides = [1, 1]} : vector<16x96xf32> to vector<8x8xf32>
    %72 = vector.extract_strided_slice %29 {offsets = [0, 88], sizes = [8, 8], strides = [1, 1]} : vector<16x96xf32> to vector<8x8xf32>
    %73 = vector.extract_strided_slice %29 {offsets = [8, 88], sizes = [8, 8], strides = [1, 1]} : vector<16x96xf32> to vector<8x8xf32>
    %74 = vector.shape_cast %66 : vector<8x8xf32> to vector<1x8x8xf32>
    %75 = vector.shape_cast %67 : vector<8x8xf32> to vector<1x8x8xf32>
    %76 = vector.shape_cast %68 : vector<8x8xf32> to vector<1x8x8xf32>
    %77 = vector.shape_cast %69 : vector<8x8xf32> to vector<1x8x8xf32>
    %78 = vector.shape_cast %70 : vector<8x8xf32> to vector<1x8x8xf32>
    %79 = vector.shape_cast %71 : vector<8x8xf32> to vector<1x8x8xf32>
    %80 = vector.shape_cast %72 : vector<8x8xf32> to vector<1x8x8xf32>
    %81 = vector.shape_cast %73 : vector<8x8xf32> to vector<1x8x8xf32>
    %82 = tpu.concatenate %74, %75, %76, %77, %78, %79, %80, %81 in 0 : vector<1x8x8xf32>, vector<1x8x8xf32>, vector<1x8x8xf32>, vector<1x8x8xf32>, vector<1x8x8xf32>, vector<1x8x8xf32>, vector<1x8x8xf32>, vector<1x8x8xf32> -> vector<8x8x8xf32>
    "tpu.trace_start"() <{level = 10 : i32, message = "gnd,gmd->gnm"}> : () -> ()
    %cst_15 = arith.constant dense<0.000000e+00> : vector<8x8x8xf32>
    %83 = tpu.matmul %48, %65, %cst_15 {dimension_numbers = #tpu.dot_dimension_numbers<[2], [2], [1], [1], [0, 0, 0, 1, 1, 1], [0], [0]>} : vector<8x8x8xf32>, vector<8x8x8xf32>, vector<8x8x8xf32> -> vector<8x8x8xf32>
    "tpu.trace_stop"() : () -> ()
    %cst_16 = arith.constant dense<0xFF800000> : vector<8x8xf32>
    %84 = vector.multi_reduction <maximumf>, %83, %cst_16 [2] : vector<8x8x8xf32> to vector<8x8xf32>
    %85 = vector.shape_cast %84 : vector<8x8xf32> to vector<8x8x1xf32>
    %86 = vector.broadcast %85 : vector<8x8x1xf32> to vector<8x8x8xf32>
    %87 = arith.subf %83, %86 : vector<8x8x8xf32>
    %88 = math.exp %87 : vector<8x8x8xf32>
    %cst_17 = arith.constant dense<0.000000e+00> : vector<8x8xf32>
    %89 = vector.multi_reduction <add>, %88, %cst_17 [2] : vector<8x8x8xf32> to vector<8x8xf32>
    %90 = vector.shape_cast %89 : vector<8x8xf32> to vector<8x8x1xf32>
    %91 = vector.broadcast %90 : vector<8x8x1xf32> to vector<8x8x8xf32>
    %92 = arith.divf %88, %91 : vector<8x8x8xf32>
    "tpu.trace_start"() <{level = 10 : i32, message = "gnm,gmd->gnd"}> : () -> ()
    %cst_18 = arith.constant dense<0.000000e+00> : vector<8x8x8xf32>
    %93 = tpu.matmul %92, %82, %cst_18 {dimension_numbers = #tpu.dot_dimension_numbers<[2], [1], [1], [2], [0, 0, 0, 1, 1, 2], [0], [0]>} : vector<8x8x8xf32>, vector<8x8x8xf32>, vector<8x8x8xf32> -> vector<8x8x8xf32>
    "tpu.trace_stop"() : () -> ()
    %94 = vector.extract_strided_slice %93 {offsets = [0, 0, 0], sizes = [1, 8, 8], strides = [1, 1, 1]} : vector<8x8x8xf32> to vector<1x8x8xf32>
    %95 = vector.shape_cast %94 : vector<1x8x8xf32> to vector<8x8xf32>
    %96 = vector.extract_strided_slice %93 {offsets = [2, 0, 0], sizes = [1, 8, 8], strides = [1, 1, 1]} : vector<8x8x8xf32> to vector<1x8x8xf32>
    %97 = vector.shape_cast %96 : vector<1x8x8xf32> to vector<8x8xf32>
    %98 = vector.extract_strided_slice %93 {offsets = [4, 0, 0], sizes = [1, 8, 8], strides = [1, 1, 1]} : vector<8x8x8xf32> to vector<1x8x8xf32>
    %99 = vector.shape_cast %98 : vector<1x8x8xf32> to vector<8x8xf32>
    %100 = vector.extract_strided_slice %93 {offsets = [6, 0, 0], sizes = [1, 8, 8], strides = [1, 1, 1]} : vector<8x8x8xf32> to vector<1x8x8xf32>
    %101 = vector.shape_cast %100 : vector<1x8x8xf32> to vector<8x8xf32>
    %102 = tpu.concatenate %95, %97, %99, %101 in 1 : vector<8x8xf32>, vector<8x8xf32>, vector<8x8xf32>, vector<8x8xf32> -> vector<8x32xf32>
    %103 = vector.extract_strided_slice %93 {offsets = [1, 0, 0], sizes = [1, 8, 8], strides = [1, 1, 1]} : vector<8x8x8xf32> to vector<1x8x8xf32>
    %104 = vector.shape_cast %103 : vector<1x8x8xf32> to vector<8x8xf32>
    %105 = vector.extract_strided_slice %93 {offsets = [3, 0, 0], sizes = [1, 8, 8], strides = [1, 1, 1]} : vector<8x8x8xf32> to vector<1x8x8xf32>
    %106 = vector.shape_cast %105 : vector<1x8x8xf32> to vector<8x8xf32>
    %107 = vector.extract_strided_slice %93 {offsets = [5, 0, 0], sizes = [1, 8, 8], strides = [1, 1, 1]} : vector<8x8x8xf32> to vector<1x8x8xf32>
    %108 = vector.shape_cast %107 : vector<1x8x8xf32> to vector<8x8xf32>
    %109 = vector.extract_strided_slice %93 {offsets = [7, 0, 0], sizes = [1, 8, 8], strides = [1, 1, 1]} : vector<8x8x8xf32> to vector<1x8x8xf32>
    %110 = vector.shape_cast %109 : vector<1x8x8xf32> to vector<8x8xf32>
    %111 = tpu.concatenate %104, %106, %108, %110 in 1 : vector<8x8xf32>, vector<8x8xf32>, vector<8x8xf32>, vector<8x8xf32> -> vector<8x32xf32>
    %112 = tpu.concatenate %102, %111 in 0 : vector<8x32xf32>, vector<8x32xf32> -> vector<16x32xf32>
    %c0_19 = arith.constant 0 : index
    %c0_20 = arith.constant 0 : index
    %113 = vector.load %arg5[%c0_19, %c0_20] : memref<32x32xf32, #tpu.memory_space<vmem>>, vector<32x32xf32>
    %cst_21 = arith.constant dense<0.000000e+00> : vector<16x32xf32>
    %114 = tpu.matmul %112, %113, %cst_21 {dimension_numbers = #tpu.dot_dimension_numbers<[1], [0], [0], [1], [0, 0, 1, 1], [], []>} : vector<16x32xf32>, vector<32x32xf32>, vector<16x32xf32> -> vector<16x32xf32>
    %c0_22 = arith.constant 0 : index
    %c0_23 = arith.constant 0 : index
    %115 = vector.load %arg6[%c0_22, %c0_23] : memref<1x32xf32, #tpu.memory_space<vmem>>, vector<1x32xf32>
    %116 = vector.broadcast %115 : vector<1x32xf32> to vector<16x32xf32>
    %117 = arith.addf %114, %116 : vector<16x32xf32>
    %118 = arith.addf %0, %117 : vector<16x32xf32>
    %c0_24 = arith.constant 0 : index
    %c0_25 = arith.constant 0 : index
    %119 = vector.load %arg7[%c0_24, %c0_25] : memref<1x32xf32, #tpu.memory_space<vmem>>, vector<1x32xf32>
    %c0_26 = arith.constant 0 : index
    %c0_27 = arith.constant 0 : index
    %120 = vector.load %arg8[%c0_26, %c0_27] : memref<1x32xf32, #tpu.memory_space<vmem>>, vector<1x32xf32>
    %cst_28 = arith.constant dense<0.000000e+00> : vector<16xf32>
    %121 = vector.multi_reduction <add>, %118, %cst_28 [1] : vector<16x32xf32> to vector<16xf32>
    %122 = vector.shape_cast %121 : vector<16xf32> to vector<16x1xf32>
    %123 = arith.mulf %118, %118 : vector<16x32xf32>
    %cst_29 = arith.constant dense<0.000000e+00> : vector<16xf32>
    %124 = vector.multi_reduction <add>, %123, %cst_29 [1] : vector<16x32xf32> to vector<16xf32>
    %125 = vector.shape_cast %124 : vector<16xf32> to vector<16x1xf32>
    %cst_30 = arith.constant 3.125000e-02 : f32
    %126 = vector.broadcast %cst_30 : f32 to vector<16x1xf32>
    %127 = arith.mulf %122, %126 : vector<16x1xf32>
    %cst_31 = arith.constant 3.125000e-02 : f32
    %128 = vector.broadcast %cst_31 : f32 to vector<16x1xf32>
    %129 = arith.mulf %125, %128 : vector<16x1xf32>
    %130 = arith.mulf %127, %127 : vector<16x1xf32>
    %131 = arith.subf %129, %130 : vector<16x1xf32>
    %132 = vector.broadcast %127 : vector<16x1xf32> to vector<16x32xf32>
    %133 = arith.subf %118, %132 : vector<16x32xf32>
    %cst_32 = arith.constant 9.99999997E-7 : f32
    %134 = vector.broadcast %cst_32 : f32 to vector<16x1xf32>
    %135 = arith.addf %131, %134 : vector<16x1xf32>
    %136 = math.rsqrt %135 : vector<16x1xf32>
    %137 = vector.broadcast %136 : vector<16x1xf32> to vector<16x32xf32>
    %138 = arith.mulf %133, %137 : vector<16x32xf32>
    %139 = vector.broadcast %119 : vector<1x32xf32> to vector<16x32xf32>
    %140 = arith.mulf %138, %139 : vector<16x32xf32>
    %141 = vector.broadcast %120 : vector<1x32xf32> to vector<16x32xf32>
    %142 = arith.addf %140, %141 : vector<16x32xf32>
    %c0_33 = arith.constant 0 : index
    %c0_34 = arith.constant 0 : index
    %143 = vector.load %arg9[%c0_33, %c0_34] : memref<32x128xf32, #tpu.memory_space<vmem>>, vector<32x128xf32>
    %cst_35 = arith.constant dense<0.000000e+00> : vector<16x128xf32>
    %144 = tpu.matmul %142, %143, %cst_35 {dimension_numbers = #tpu.dot_dimension_numbers<[1], [0], [0], [1], [0, 0, 1, 1], [], []>} : vector<16x32xf32>, vector<32x128xf32>, vector<16x128xf32> -> vector<16x128xf32>
    %c0_36 = arith.constant 0 : index
    %c0_37 = arith.constant 0 : index
    %145 = vector.load %arg10[%c0_36, %c0_37] : memref<1x128xf32, #tpu.memory_space<vmem>>, vector<1x128xf32>
    %146 = vector.broadcast %145 : vector<1x128xf32> to vector<16x128xf32>
    %147 = arith.addf %144, %146 : vector<16x128xf32>
    %cst_38 = arith.constant 5.000000e-01 : f32
    %148 = vector.broadcast %cst_38 : f32 to vector<16x128xf32>
    %149 = arith.mulf %148, %147 : vector<16x128xf32>
    %cst_39 = arith.constant 0.707106769 : f32
    %150 = vector.broadcast %cst_39 : f32 to vector<16x128xf32>
    %151 = arith.mulf %147, %150 : vector<16x128xf32>
    %152 = math.erf %151 : vector<16x128xf32>
    %cst_40 = arith.constant 1.000000e+00 : f32
    %153 = vector.broadcast %cst_40 : f32 to vector<16x128xf32>
    %154 = arith.addf %153, %152 : vector<16x128xf32>
    %155 = arith.mulf %149, %154 : vector<16x128xf32>
    %c0_41 = arith.constant 0 : index
    %c0_42 = arith.constant 0 : index
    %156 = vector.load %arg11[%c0_41, %c0_42] : memref<128x32xf32, #tpu.memory_space<vmem>>, vector<128x32xf32>
    %cst_43 = arith.constant dense<0.000000e+00> : vector<16x32xf32>
    %157 = tpu.matmul %155, %156, %cst_43 {dimension_numbers = #tpu.dot_dimension_numbers<[1], [0], [0], [1], [0, 0, 1, 1], [], []>} : vector<16x128xf32>, vector<128x32xf32>, vector<16x32xf32> -> vector<16x32xf32>
    %c0_44 = arith.constant 0 : index
    %c0_45 = arith.constant 0 : index
    %158 = vector.load %arg12[%c0_44, %c0_45] : memref<1x32xf32, #tpu.memory_space<vmem>>, vector<1x32xf32>
    %159 = vector.broadcast %158 : vector<1x32xf32> to vector<16x32xf32>
    %160 = arith.addf %157, %159 : vector<16x32xf32>
    %161 = arith.addf %118, %160 : vector<16x32xf32>
    %c0_46 = arith.constant 0 : index
    %c0_47 = arith.constant 0 : index
    %162 = vector.load %arg13[%c0_46, %c0_47] : memref<16x32xf32, #tpu.memory_space<vmem>>, vector<16x32xf32>
    tpu.vector_store %arg13[%c0_46, %c0_47], %161 {strides = array<i32>} : memref<16x32xf32, #tpu.memory_space<vmem>>, vector<16x32xf32>,
    return
  }
}

</mosaic_0001>

<llo_original>
// kernel: tpu_custom_call.1
$region0: #{tpu_custom_call.1}
  #allocation0 [shape = 'u32[]', space=smem, size = 0x4, offset = 0x4, fixed_abs, tag = 'smem constant byte address 0x4 - core index']
  #allocation1 [shape = 'u32[144,128]{1,0:T(1,128)}', space=vmem, size = 0x12000, scoped, tag = 'internal scratch']
  %s0 = inlined_call_operand.vmem [shape: f32[16,32], index: 0, kind: input, shape index: {}]
  %s1 = inlined_call_operand.vmem [shape: f32[1,32], index: 1, kind: input, shape index: {}]
  %s2 = inlined_call_operand.vmem [shape: f32[1,32], index: 2, kind: input, shape index: {}]
  %s3 = inlined_call_operand.vmem [shape: f32[32,96], index: 3, kind: input, shape index: {}]
  %s4 = inlined_call_operand.vmem [shape: f32[1,96], index: 4, kind: input, shape index: {}]
  %s5 = inlined_call_operand.vmem [shape: f32[32,32], index: 5, kind: input, shape index: {}]
  %s6 = inlined_call_operand.vmem [shape: f32[1,32], index: 6, kind: input, shape index: {}]
  %s7 = inlined_call_operand.vmem [shape: f32[1,32], index: 7, kind: input, shape index: {}]
  %s8 = inlined_call_operand.vmem [shape: f32[1,32], index: 8, kind: input, shape index: {}]
  %s9 = inlined_call_operand.vmem [shape: f32[32,128], index: 9, kind: input, shape index: {}]
  %s10 = inlined_call_operand.vmem [shape: f32[1,128], index: 10, kind: input, shape index: {}]
  %s11 = inlined_call_operand.vmem [shape: f32[128,32], index: 11, kind: input, shape index: {}]
  %s12 = inlined_call_operand.vmem [shape: f32[1,32], index: 12, kind: input, shape index: {}]
  %s13 = inlined_call_operand.hbm [shape: f32[16,32], index: 13, kind: output, shape index: {}]
  %s14 = sld [smem:[#allocation0]]
  $region62: #{tpu_custom_call.1} parent=0
    _
  %s16 = ssub.s32 1, %s14
  %s17 = scalar_select 0, %s16, %s14
  $region1: #{tpu_custom_call.1} parent=0
    #allocation2 [shape = 'u8[8192]{0}', space=vmem, size = 0x2000, scoped, tag = 'output window, operand 0, single buffered']
    #allocation3 [shape = 's32[1]{0}', space=sflag, size = 0x4, scoped, tag = 'scoped memory for tpu_custom_call.1']
    %18 = vsyncpa [#allocation3], 0
    // Predicated region
    $region2: #{tpu_custom_call.1} parent=1 // pred_check
      _
    $region3: #{tpu_custom_call.1} parent=1 // pred_check_branch
      %20 = sbr.rel (0) target = $region5
    $region4: #{tpu_custom_call.1} parent=1 // pred_region
      _
    $region5: #{tpu_custom_call.1} parent=1 // pred_fallthru
      _
    // Predicated region
    $region6: #{tpu_custom_call.1} parent=1 // pred_check
      _
    $region7: #{tpu_custom_call.1} parent=1 // pred_check_branch
      %22 = sbr.rel (0) target = $region9
    $region8: #{tpu_custom_call.1} parent=1 // pred_region
      _
    $region9: #{tpu_custom_call.1} parent=1 // pred_fallthru
      _
    // Predicated region
    $region10: #{tpu_custom_call.1} parent=1 // pred_check
      _
    $region11: #{tpu_custom_call.1} parent=1 // pred_check_branch
      %24 = sbr.rel (0) target = $region13
    $region12: #{tpu_custom_call.1} parent=1 // pred_region
      _
    $region13: #{tpu_custom_call.1} parent=1 // pred_fallthru
      _
    // Predicated region
    $region14: #{tpu_custom_call.1} parent=1 // pred_check
      _
    $region15: #{tpu_custom_call.1} parent=1 // pred_check_branch
      %26 = sbr.rel (0) target = $region17
    $region16: #{tpu_custom_call.1} parent=1 // pred_region
      _
    $region17: #{tpu_custom_call.1} parent=1 // pred_fallthru
      _
    // Predicated region
    $region18: #{tpu_custom_call.1} parent=1 // pred_check
      _
    $region19: #{tpu_custom_call.1} parent=1 // pred_check_branch
      %28 = sbr.rel (0) target = $region21
    $region20: #{tpu_custom_call.1} parent=1 // pred_region
      _
    $region21: #{tpu_custom_call.1} parent=1 // pred_fallthru
      _
    // Predicated region
    $region22: #{tpu_custom_call.1} parent=1 // pred_check
      _
    $region23: #{tpu_custom_call.1} parent=1 // pred_check_branch
      %30 = sbr.rel (0) target = $region25
    $region24: #{tpu_custom_call.1} parent=1 // pred_region
      _
    $region25: #{tpu_custom_call.1} parent=1 // pred_fallthru
      _
    // Predicated region
    $region26: #{tpu_custom_call.1} parent=1 // pred_check
      _
    $region27: #{tpu_custom_call.1} parent=1 // pred_check_branch
      %32 = sbr.rel (0) target = $region29
    $region28: #{tpu_custom_call.1} parent=1 // pred_region
      _
    $region29: #{tpu_custom_call.1} parent=1 // pred_fallthru
      _
    // Predicated region
    $region30: #{tpu_custom_call.1} parent=1 // pred_check
      _
    $region31: #{tpu_custom_call.1} parent=1 // pred_check_branch
      %34 = sbr.rel (0) target = $region33
    $region32: #{tpu_custom_call.1} parent=1 // pred_region
      _
    $region33: #{tpu_custom_call.1} parent=1 // pred_fallthru
      _
    // Predicated region
    $region34: #{tpu_custom_call.1} parent=1 // pred_check
      _
    $region35: #{tpu_custom_call.1} parent=1 // pred_check_branch
      %36 = sbr.rel (0) target = $region37
    $region36: #{tpu_custom_call.1} parent=1 // pred_region
      _
    $region37: #{tpu_custom_call.1} parent=1 // pred_fallthru
      _
    // Predicated region
    $region38: #{tpu_custom_call.1} parent=1 // pred_check
      _
    $region39: #{tpu_custom_call.1} parent=1 // pred_check_branch
      %38 = sbr.rel (0) target = $region41
    $region40: #{tpu_custom_call.1} parent=1 // pred_region
      _
    $region41: #{tpu_custom_call.1} parent=1 // pred_fallthru
      _
    // Predicated region
    $region42: #{tpu_custom_call.1} parent=1 // pred_check
      _
    $region43: #{tpu_custom_call.1} parent=1 // pred_check_branch
      %40 = sbr.rel (0) target = $region45
    $region44: #{tpu_custom_call.1} parent=1 // pred_region
      _
    $region45: #{tpu_custom_call.1} parent=1 // pred_fallthru
      _
    // Predicated region
    $region46: #{tpu_custom_call.1} parent=1 // pred_check
      _
    $region47: #{tpu_custom_call.1} parent=1 // pred_check_branch
      %42 = sbr.rel (0) target = $region49
    $region48: #{tpu_custom_call.1} parent=1 // pred_region
      _
    $region49: #{tpu_custom_call.1} parent=1 // pred_fallthru
      _
    // Predicated region
    $region50: #{tpu_custom_call.1} parent=1 // pred_check
      _
    $region51: #{tpu_custom_call.1} parent=1 // pred_check_branch
      %44 = sbr.rel (0) target = $region53
    $region52: #{tpu_custom_call.1} parent=1 // pred_region
      _
    $region53: #{tpu_custom_call.1} parent=1 // pred_fallthru
      _
    %v45 = vld [vmem:[%s0] sm:$0xff]
    %v46 = vld [vmem:[%s0 + $0x8] sm:$0xff]
    %v47 = vld [vmem:[%s1] sm:$0x1]
    %v48 = vld [vmem:[%s2] sm:$0x1]
    %vm49 = vcmask 261120
    %v50 = vsel %vm49, %v45, 0.0
    %51 = vadd.xlane.f32.xlu0 %v50
    %v52 = vpop.xlane.xlu0 %51
    %v53 = vsel %vm49, %v46, 0.0
    %54 = vadd.xlane.f32.xlu0 %v53
    %v55 = vpop.xlane.xlu0 %54
    %v56 = vmul.f32 %v45, %v45
    %v57 = vmul.f32 %v46, %v46
    %v58 = vsel %vm49, %v56, 0.0
    %59 = vadd.xlane.f32.xlu0 %v58
    %v60 = vpop.xlane.xlu0 %59
    %v61 = vsel %vm49, %v57, 0.0
    %62 = vadd.xlane.f32.xlu0 %v61
    %v63 = vpop.xlane.xlu0 %62
    %v64 = vmul.f32 %v52, 0.03125
    %v65 = vmul.f32 %v55, 0.03125
    %v66 = vmul.f32 %v60, 0.03125
    %v67 = vmul.f32 %v63, 0.03125
    %v68 = vmul.f32 %v64, %v64
    %v69 = vmul.f32 %v65, %v65
    %v70 = vsub.f32 %v66, %v68
    %v71 = vsub.f32 %v67, %v69
    %v72 = vsub.f32 %v45, %v64
    %v73 = vsub.f32 %v46, %v65
    %v74 = vadd.f32 %v70, 1e-06
    %v75 = vadd.f32 %v71, 1e-06
    %v76 = vrsqrt.pop %v74
    %v77 = vrsqrt.pop %v75
    %v78 = vmul.f32 %v72, %v76
    %v79 = vmul.f32 %v73, %v77
    %v81 = vlaneseq
    %v82 = vshrl.u32 %v81, 7
    %v83 = vsub.s32 0, %v82
    %v84 = vrot.slane %v47, %v83
    %v86 = vmul.f32 %v78, %v84
    %v87 = vmul.f32 %v79, %v84
    %v89 = vlaneseq
    %v90 = vshrl.u32 %v89, 7
    %v91 = vsub.s32 0, %v90
    %v92 = vrot.slane %v48, %v91
    %v94 = vadd.f32 %v86, %v92
    %v95 = vadd.f32 %v87, %v92
    %v96 = vld [vmem:[%s3] sm:$0xff]
    %v97 = vld [vmem:[%s3 + $0x8] sm:$0xff]
    %v98 = vld [vmem:[%s3 + $0x10] sm:$0xff]
    %v99 = vld [vmem:[%s3 + $0x18] sm:$0xff]
    %v100 = vld [vmem:[%s4] sm:$0x1]
    %v102 = vlaneseq
    %v103 = vshrl.u32 %v102, 7
    %v104 = vsub.s32 0, %v103
    %v105 = vrot.slane %v100, %v104
    %v108 = vsel %vm49, %v94, 0
    %v111 = vsel %vm49, %v95, 0
    %113 = vmatprep.subr.mxu0 0.0
    %114 = vmatpush1.msra.mxu0 0.0
    %115 = vmatprep.subr.mxu0 0.0
    %116 = vmatpush1.msra.mxu0 0.0
    %117 = vmatprep.subr.mxu0 0.0
    %118 = vmatpush1.msra.mxu0 0.0
    %119 = vmatprep.subr.mxu0 0.0
    %120 = vmatpush1.msra.mxu0 0.0
    %121 = vmatprep.subr.mxu0 0.0
    %122 = vmatpush1.msra.mxu0 0.0
    %123 = vmatprep.subr.mxu0 0.0
    %124 = vmatpush1.msra.mxu0 0.0
    %125 = vmatprep.subr.mxu0 0.0
    %126 = vmatpush1.msra.mxu0 0.0
    %127 = vmatprep.subr.mxu0 0.0
    %128 = vmatpush1.msra.mxu0 0.0
    %129 = vmatprep.subr.mxu0 0.0
    %130 = vmatpush1.msra.mxu0 0.0
    %131 = vmatprep.subr.mxu0 0.0
    %132 = vmatpush1.msra.mxu0 0.0
    %133 = vmatprep.subr.mxu0 0.0
    %134 = vmatpush1.msra.mxu0 0.0
    %135 = vmatprep.subr.mxu0 0.0
    %136 = vmatpush1.msra.mxu0 0.0
    %137 = vmatprep.subr.mxu0 0.0
    %138 = vmatpush1.msra.mxu0 %v99
    %139 = vmatprep.subr.mxu0 0.0
    %140 = vmatpush1.msra.mxu0 %v98
    %141 = vmatprep.subr.mxu0 0.0
    %142 = vmatpush1.msra.mxu0 %v97
    %143 = vmatprep.subr.mxu0 0.0
    %144 = vmatpush1.msra.mxu0 %v96
    %145 = vmatprep.subr.mxu0 0.0
    %146 = vmatpush2.msra.mxu0 0.0
    %147 = vmatprep.subr.mxu0 0.0
    %148 = vmatpush2.msra.mxu0 0.0
    %149 = vmatprep.subr.mxu0 0.0
    %150 = vmatpush2.msra.mxu0 0.0
    %151 = vmatprep.subr.mxu0 0.0
    %152 = vmatpush2.msra.mxu0 0.0
    %153 = vmatprep.subr.mxu0 0.0
    %154 = vmatpush2.msra.mxu0 0.0
    %155 = vmatprep.subr.mxu0 0.0
    %156 = vmatpush2.msra.mxu0 0.0
    %157 = vmatprep.subr.mxu0 0.0
    %158 = vmatpush2.msra.mxu0 0.0
    %159 = vmatprep.subr.mxu0 0.0
    %160 = vmatpush2.msra.mxu0 0.0
    %161 = vmatprep.subr.mxu0 0.0
    %162 = vmatpush2.msra.mxu0 0.0
    %163 = vmatprep.subr.mxu0 0.0
    %164 = vmatpush2.msra.mxu0 0.0
    %165 = vmatprep.subr.mxu0 0.0
    %166 = vmatpush2.msra.mxu0 0.0
    %167 = vmatprep.subr.mxu0 0.0
    %168 = vmatpush2.msra.mxu0 0.0
    %169 = vmatprep.subr.mxu0 0.0
    %170 = vmatpush2.msra.mxu0 0.0
    %171 = vmatprep.subr.mxu0 0.0
    %172 = vmatpush2.msra.mxu0 0.0
    %173 = vmatprep.subr.mxu0 0.0
    %174 = vmatpush2.msra.mxu0 0.0
    %175 = vmatprep.subr.mxu0 0.0
    %176 = vmatpush2.msra.mxu0 0.0
    %177 = vmatprep.mubr.f32.mxu0 0.0
    %178 = vmatmul.mubr.f32.gmra.mxu0 %v108
    %v179 = vpop.f32.mrf.mxu0
    %v180 = vadd.f32 %v105, %v179
    %v181 = vpop.f32.mrf.mxu0
    %182 = vmatprep.mubr.f32.mxu0 0.0
    %183 = vmatmul.mubr.f32.gmra.mxu0 %v111
    %v184 = vpop.f32.mrf.mxu0
    %v185 = vadd.f32 %v105, %v184
    %v186 = vpop.f32.mrf.mxu0
    %187 = vdwg.mxu0
    %189 = vrot.lane.b32.xlu0 %v180, 120
    %v190 = vpop.permute.xlu0 %189
    %193 = vrot.lane.b32.xlu0 %v185, 120
    %v194 = vpop.permute.xlu0 %193
    %196 = vrot.lane.b32.xlu0 %v180, 112
    %v197 = vpop.permute.xlu0 %196
    %199 = vrot.lane.b32.xlu0 %v185, 112
    %v200 = vpop.permute.xlu0 %199
    %202 = vrot.lane.b32.xlu0 %v180, 104
    %v203 = vpop.permute.xlu0 %202
    %205 = vrot.lane.b32.xlu0 %v185, 104
    %v206 = vpop.permute.xlu0 %205
    %v208 = vmul.f32 %v180, 0.35355338
    %v209 = vmul.f32 %v185, 0.35355338
    %v210 = vmul.f32 %v190, 0.35355338
    %v211 = vmul.f32 %v194, 0.35355338
    %v212 = vmul.f32 %v197, 0.35355338
    %v213 = vmul.f32 %v200, 0.35355338
    %v214 = vmul.f32 %v203, 0.35355338
    %v215 = vmul.f32 %v206, 0.35355338
    %216 = vrot.lane.b32.xlu0 %v180, 96
    %v217 = vpop.permute.xlu0 %216
    %vm218 = vcmask 64512
    %v220 = vsel %vm218, %v208, 0
    %v222 = vsel %vm218, %v217, 0
    %224 = vmatprep.subr.mxu0 0.0
    %225 = vmatpush1.xpose.msra.mxu0 0.0
    %226 = vmatprep.subr.mxu0 0.0
    %227 = vmatpush1.xpose.msra.mxu0 0.0
    %228 = vmatprep.subr.mxu0 0.0
    %229 = vmatpush1.xpose.msra.mxu0 0.0
    %230 = vmatprep.subr.mxu0 0.0
    %231 = vmatpush1.xpose.msra.mxu0 0.0
    %232 = vmatprep.subr.mxu0 0.0
    %233 = vmatpush1.xpose.msra.mxu0 0.0
    %234 = vmatprep.subr.mxu0 0.0
    %235 = vmatpush1.xpose.msra.mxu0 0.0
    %236 = vmatprep.subr.mxu0 0.0
    %237 = vmatpush1.xpose.msra.mxu0 0.0
    %238 = vmatprep.subr.mxu0 0.0
    %239 = vmatpush1.xpose.msra.mxu0 0.0
    %240 = vmatprep.subr.mxu0 0.0
    %241 = vmatpush1.xpose.msra.mxu0 0.0
    %242 = vmatprep.subr.mxu0 0.0
    %243 = vmatpush1.xpose.msra.mxu0 0.0
    %244 = vmatprep.subr.mxu0 0.0
    %245 = vmatpush1.xpose.msra.mxu0 0.0
    %246 = vmatprep.subr.mxu0 0.0
    %247 = vmatpush1.xpose.msra.mxu0 0.0
    %248 = vmatprep.subr.mxu0 0.0
    %249 = vmatpush1.xpose.msra.mxu0 0.0
    %250 = vmatprep.subr.mxu0 0.0
    %251 = vmatpush1.xpose.msra.mxu0 0.0
    %252 = vmatprep.subr.mxu0 0.0
    %253 = vmatpush1.xpose.msra.mxu0 0.0
    %254 = vmatprep.subr.mxu0 0.0
    %255 = vmatpush1.xpose.msra.mxu0 %v222
    %256 = vmatprep.subr.mxu0 0.0
    %257 = vmatpush2.xpose.msra.mxu0 0.0
    %258 = vmatprep.subr.mxu0 0.0
    %259 = vmatpush2.xpose.msra.mxu0 0.0
    %260 = vmatprep.subr.mxu0 0.0
    %261 = vmatpush2.xpose.msra.mxu0 0.0
    %262 = vmatprep.subr.mxu0 0.0
    %263 = vmatpush2.xpose.msra.mxu0 0.0
    %264 = vmatprep.subr.mxu0 0.0
    %265 = vmatpush2.xpose.msra.mxu0 0.0
    %266 = vmatprep.subr.mxu0 0.0
    %267 = vmatpush2.xpose.msra.mxu0 0.0
    %268 = vmatprep.subr.mxu0 0.0
    %269 = vmatpush2.xpose.msra.mxu0 0.0
    %270 = vmatprep.subr.mxu0 0.0
    %271 = vmatpush2.xpose.msra.mxu0 0.0
    %272 = vmatprep.subr.mxu0 0.0
    %273 = vmatpush2.xpose.msra.mxu0 0.0
    %274 = vmatprep.subr.mxu0 0.0
    %275 = vmatpush2.xpose.msra.mxu0 0.0
    %276 = vmatprep.subr.mxu0 0.0
    %277 = vmatpush2.xpose.msra.mxu0 0.0
    %278 = vmatprep.subr.mxu0 0.0
    %279 = vmatpush2.xpose.msra.mxu0 0.0
    %280 = vmatprep.subr.mxu0 0.0
    %281 = vmatpush2.xpose.msra.mxu0 0.0
    %282 = vmatprep.subr.mxu0 0.0
    %283 = vmatpush2.xpose.msra.mxu0 0.0
    %284 = vmatprep.subr.mxu0 0.0
    %285 = vmatpush2.xpose.msra.mxu0 0.0
    %286 = vmatprep.subr.mxu0 0.0
    %287 = vmatpush2.xpose.msra.mxu0 0.0
    %288 = vmatprep.mubr.f32.mxu0 0.0
    %289 = vmatmul.mubr.f32.gmra.mxu0 %v220
    %v290 = vpop.f32.mrf.mxu0
    %v291 = vadd.f32 0.0, %v290
    %v292 = vpop.f32.mrf.mxu0
    %293 = vdwg.mxu0
    %294 = vrot.lane.b32.xlu0 %v185, 96
    %v295 = vpop.permute.xlu0 %294
    %v297 = vsel %vm218, %v209, 0
    %v299 = vsel %vm218, %v295, 0
    %301 = vmatprep.subr.mxu0 0.0
    %302 = vmatpush1.xpose.msra.mxu0 0.0
    %303 = vmatprep.subr.mxu0 0.0
    %304 = vmatpush1.xpose.msra.mxu0 0.0
    %305 = vmatprep.subr.mxu0 0.0
    %306 = vmatpush1.xpose.msra.mxu0 0.0
    %307 = vmatprep.subr.mxu0 0.0
    %308 = vmatpush1.xpose.msra.mxu0 0.0
    %309 = vmatprep.subr.mxu0 0.0
    %310 = vmatpush1.xpose.msra.mxu0 0.0
    %311 = vmatprep.subr.mxu0 0.0
    %312 = vmatpush1.xpose.msra.mxu0 0.0
    %313 = vmatprep.subr.mxu0 0.0
    %314 = vmatpush1.xpose.msra.mxu0 0.0
    %315 = vmatprep.subr.mxu0 0.0
    %316 = vmatpush1.xpose.msra.mxu0 0.0
    %317 = vmatprep.subr.mxu0 0.0
    %318 = vmatpush1.xpose.msra.mxu0 0.0
    %319 = vmatprep.subr.mxu0 0.0
    %320 = vmatpush1.xpose.msra.mxu0 0.0
    %321 = vmatprep.subr.mxu0 0.0
    %322 = vmatpush1.xpose.msra.mxu0 0.0
    %323 = vmatprep.subr.mxu0 0.0
    %324 = vmatpush1.xpose.msra.mxu0 0.0
    %325 = vmatprep.subr.mxu0 0.0
    %326 = vmatpush1.xpose.msra.mxu0 0.0
    %327 = vmatprep.subr.mxu0 0.0
    %328 = vmatpush1.xpose.msra.mxu0 0.0
    %329 = vmatprep.subr.mxu0 0.0
    %330 = vmatpush1.xpose.msra.mxu0 0.0
    %331 = vmatprep.subr.mxu0 0.0
    %332 = vmatpush1.xpose.msra.mxu0 %v299
    %333 = vmatprep.subr.mxu0 0.0
    %334 = vmatpush2.xpose.msra.mxu0 0.0
    %335 = vmatprep.subr.mxu0 0.0
    %336 = vmatpush2.xpose.msra.mxu0 0.0
    %337 = vmatprep.subr.mxu0 0.0
    %338 = vmatpush2.xpose.msra.mxu0 0.0
    %339 = vmatprep.subr.mxu0 0.0
    %340 = vmatpush2.xpose.msra.mxu0 0.0
    %341 = vmatprep.subr.mxu0 0.0
    %342 = vmatpush2.xpose.msra.mxu0 0.0
    %343 = vmatprep.subr.mxu0 0.0
    %344 = vmatpush2.xpose.msra.mxu0 0.0
    %345 = vmatprep.subr.mxu0 0.0
    %346 = vmatpush2.xpose.msra.mxu0 0.0
    %347 = vmatprep.subr.mxu0 0.0
    %348 = vmatpush2.xpose.msra.mxu0 0.0
    %349 = vmatprep.subr.mxu0 0.0
    %350 = vmatpush2.xpose.msra.mxu0 0.0
    %351 = vmatprep.subr.mxu0 0.0
    %352 = vmatpush2.xpose.msra.mxu0 0.0
    %353 = vmatprep.subr.mxu0 0.0
    %354 = vmatpush2.xpose.msra.mxu0 0.0
    %355 = vmatprep.subr.mxu0 0.0
    %356 = vmatpush2.xpose.msra.mxu0 0.0
    %357 = vmatprep.subr.mxu0 0.0
    %358 = vmatpush2.xpose.msra.mxu0 0.0
    %359 = vmatprep.subr.mxu0 0.0
    %360 = vmatpush2.xpose.msra.mxu0 0.0
    %361 = vmatprep.subr.mxu0 0.0
    %362 = vmatpush2.xpose.msra.mxu0 0.0
    %363 = vmatprep.subr.mxu0 0.0
    %364 = vmatpush2.xpose.msra.mxu0 0.0
    %365 = vmatprep.mubr.f32.mxu0 0.0
    %366 = vmatmul.mubr.f32.gmra.mxu0 %v297
    %v367 = vpop.f32.mrf.mxu0
    %v368 = vadd.f32 0.0, %v367
    %v369 = vpop.f32.mrf.mxu0
    %370 = vdwg.mxu0
    %371 = vrot.lane.b32.xlu0 %v190, 96
    %v372 = vpop.permute.xlu0 %371
    %v374 = vsel %vm218, %v210, 0
    %v376 = vsel %vm218, %v372, 0
    %378 = vmatprep.subr.mxu0 0.0
    %379 = vmatpush1.xpose.msra.mxu0 0.0
    %380 = vmatprep.subr.mxu0 0.0
    %381 = vmatpush1.xpose.msra.mxu0 0.0
    %382 = vmatprep.subr.mxu0 0.0
    %383 = vmatpush1.xpose.msra.mxu0 0.0
    %384 = vmatprep.subr.mxu0 0.0
    %385 = vmatpush1.xpose.msra.mxu0 0.0
    %386 = vmatprep.subr.mxu0 0.0
    %387 = vmatpush1.xpose.msra.mxu0 0.0
    %388 = vmatprep.subr.mxu0 0.0
    %389 = vmatpush1.xpose.msra.mxu0 0.0
    %390 = vmatprep.subr.mxu0 0.0
    %391 = vmatpush1.xpose.msra.mxu0 0.0
    %392 = vmatprep.subr.mxu0 0.0
    %393 = vmatpush1.xpose.msra.mxu0 0.0
    %394 = vmatprep.subr.mxu0 0.0
    %395 = vmatpush1.xpose.msra.mxu0 0.0
    %396 = vmatprep.subr.mxu0 0.0
    %397 = vmatpush1.xpose.msra.mxu0 0.0
    %398 = vmatprep.subr.mxu0 0.0
    %399 = vmatpush1.xpose.msra.mxu0 0.0
    %400 = vmatprep.subr.mxu0 0.0
    %401 = vmatpush1.xpose.msra.mxu0 0.0
    %402 = vmatprep.subr.mxu0 0.0
    %403 = vmatpush1.xpose.msra.mxu0 0.0
    %404 = vmatprep.subr.mxu0 0.0
    %405 = vmatpush1.xpose.msra.mxu0 0.0
    %406 = vmatprep.subr.mxu0 0.0
    %407 = vmatpush1.xpose.msra.mxu0 0.0
    %408 = vmatprep.subr.mxu0 0.0
    %409 = vmatpush1.xpose.msra.mxu0 %v376
    %410 = vmatprep.subr.mxu0 0.0
    %411 = vmatpush2.xpose.msra.mxu0 0.0
    %412 = vmatprep.subr.mxu0 0.0
    %413 = vmatpush2.xpose.msra.mxu0 0.0
    %414 = vmatprep.subr.mxu0 0.0
    %415 = vmatpush2.xpose.msra.mxu0 0.0
    %416 = vmatprep.subr.mxu0 0.0
    %417 = vmatpush2.xpose.msra.mxu0 0.0
    %418 = vmatprep.subr.mxu0 0.0
    %419 = vmatpush2.xpose.msra.mxu0 0.0
    %420 = vmatprep.subr.mxu0 0.0
    %421 = vmatpush2.xpose.msra.mxu0 0.0
    %422 = vmatprep.subr.mxu0 0.0
    %423 = vmatpush2.xpose.msra.mxu0 0.0
    %424 = vmatprep.subr.mxu0 0.0
    %425 = vmatpush2.xpose.msra.mxu0 0.0
    %426 = vmatprep.subr.mxu0 0.0
    %427 = vmatpush2.xpose.msra.mxu0 0.0
    %428 = vmatprep.subr.mxu0 0.0
    %429 = vmatpush2.xpose.msra.mxu0 0.0
    %430 = vmatprep.subr.mxu0 0.0
    %431 = vmatpush2.xpose.msra.mxu0 0.0
    %432 = vmatprep.subr.mxu0 0.0
    %433 = vmatpush2.xpose.msra.mxu0 0.0
    %434 = vmatprep.subr.mxu0 0.0
    %435 = vmatpush2.xpose.msra.mxu0 0.0
    %436 = vmatprep.subr.mxu0 0.0
    %437 = vmatpush2.xpose.msra.mxu0 0.0
    %438 = vmatprep.subr.mxu0 0.0
    %439 = vmatpush2.xpose.msra.mxu0 0.0
    %440 = vmatprep.subr.mxu0 0.0
    %441 = vmatpush2.xpose.msra.mxu0 0.0
    %442 = vmatprep.mubr.f32.mxu0 0.0
    %443 = vmatmul.mubr.f32.gmra.mxu0 %v374
    %v444 = vpop.f32.mrf.mxu0
    %v445 = vadd.f32 0.0, %v444
    %v446 = vpop.f32.mrf.mxu0
    %447 = vdwg.mxu0
    %448 = vrot.lane.b32.xlu0 %v194, 96
    %v449 = vpop.permute.xlu0 %448
    %v451 = vsel %vm218, %v211, 0
    %v453 = vsel %vm218, %v449, 0
    %455 = vmatprep.subr.mxu0 0.0
    %456 = vmatpush1.xpose.msra.mxu0 0.0
    %457 = vmatprep.subr.mxu0 0.0
    %458 = vmatpush1.xpose.msra.mxu0 0.0
    %459 = vmatprep.subr.mxu0 0.0
    %460 = vmatpush1.xpose.msra.mxu0 0.0
    %461 = vmatprep.subr.mxu0 0.0
    %462 = vmatpush1.xpose.msra.mxu0 0.0
    %463 = vmatprep.subr.mxu0 0.0
    %464 = vmatpush1.xpose.msra.mxu0 0.0
    %465 = vmatprep.subr.mxu0 0.0
    %466 = vmatpush1.xpose.msra.mxu0 0.0
    %467 = vmatprep.subr.mxu0 0.0
    %468 = vmatpush1.xpose.msra.mxu0 0.0
    %469 = vmatprep.subr.mxu0 0.0
    %470 = vmatpush1.xpose.msra.mxu0 0.0
    %471 = vmatprep.subr.mxu0 0.0
    %472 = vmatpush1.xpose.msra.mxu0 0.0
    %473 = vmatprep.subr.mxu0 0.0
    %474 = vmatpush1.xpose.msra.mxu0 0.0
    %475 = vmatprep.subr.mxu0 0.0
    %476 = vmatpush1.xpose.msra.mxu0 0.0
    %477 = vmatprep.subr.mxu0 0.0
    %478 = vmatpush1.xpose.msra.mxu0 0.0
    %479 = vmatprep.subr.mxu0 0.0
    %480 = vmatpush1.xpose.msra.mxu0 0.0
    %481 = vmatprep.subr.mxu0 0.0
    %482 = vmatpush1.xpose.msra.mxu0 0.0
    %483 = vmatprep.subr.mxu0 0.0
    %484 = vmatpush1.xpose.msra.mxu0 0.0
    %485 = vmatprep.subr.mxu0 0.0
    %486 = vmatpush1.xpose.msra.mxu0 %v453
    %487 = vmatprep.subr.mxu0 0.0
    %488 = vmatpush2.xpose.msra.mxu0 0.0
    %489 = vmatprep.subr.mxu0 0.0
    %490 = vmatpush2.xpose.msra.mxu0 0.0
    %491 = vmatprep.subr.mxu0 0.0
    %492 = vmatpush2.xpose.msra.mxu0 0.0
    %493 = vmatprep.subr.mxu0 0.0
    %494 = vmatpush2.xpose.msra.mxu0 0.0
    %495 = vmatprep.subr.mxu0 0.0
    %496 = vmatpush2.xpose.msra.mxu0 0.0
    %497 = vmatprep.subr.mxu0 0.0
    %498 = vmatpush2.xpose.msra.mxu0 0.0
    %499 = vmatprep.subr.mxu0 0.0
    %500 = vmatpush2.xpose.msra.mxu0 0.0
    %501 = vmatprep.subr.mxu0 0.0
    %502 = vmatpush2.xpose.msra.mxu0 0.0
    %503 = vmatprep.subr.mxu0 0.0
    %504 = vmatpush2.xpose.msra.mxu0 0.0
    %505 = vmatprep.subr.mxu0 0.0
    %506 = vmatpush2.xpose.msra.mxu0 0.0
    %507 = vmatprep.subr.mxu0 0.0
    %508 = vmatpush2.xpose.msra.mxu0 0.0
    %509 = vmatprep.subr.mxu0 0.0
    %510 = vmatpush2.xpose.msra.mxu0 0.0
    %511 = vmatprep.subr.mxu0 0.0
    %512 = vmatpush2.xpose.msra.mxu0 0.0
    %513 = vmatprep.subr.mxu0 0.0
    %514 = vmatpush2.xpose.msra.mxu0 0.0
    %515 = vmatprep.subr.mxu0 0.0
    %516 = vmatpush2.xpose.msra.mxu0 0.0
    %517 = vmatprep.subr.mxu0 0.0
    %518 = vmatpush2.xpose.msra.mxu0 0.0
    %519 = vmatprep.mubr.f32.mxu0 0.0
    %520 = vmatmul.mubr.f32.gmra.mxu0 %v451
    %v521 = vpop.f32.mrf.mxu0
    %v522 = vadd.f32 0.0, %v521
    %v523 = vpop.f32.mrf.mxu0
    %524 = vdwg.mxu0
    %525 = vrot.lane.b32.xlu0 %v197, 96
    %v526 = vpop.permute.xlu0 %525
    %v528 = vsel %vm218, %v212, 0
    %v530 = vsel %vm218, %v526, 0
    %532 = vmatprep.subr.mxu0 0.0
    %533 = vmatpush1.xpose.msra.mxu0 0.0
    %534 = vmatprep.subr.mxu0 0.0
    %535 = vmatpush1.xpose.msra.mxu0 0.0
    %536 = vmatprep.subr.mxu0 0.0
    %537 = vmatpush1.xpose.msra.mxu0 0.0
    %538 = vmatprep.subr.mxu0 0.0
    %539 = vmatpush1.xpose.msra.mxu0 0.0
    %540 = vmatprep.subr.mxu0 0.0
    %541 = vmatpush1.xpose.msra.mxu0 0.0
    %542 = vmatprep.subr.mxu0 0.0
    %543 = vmatpush1.xpose.msra.mxu0 0.0
    %544 = vmatprep.subr.mxu0 0.0
    %545 = vmatpush1.xpose.msra.mxu0 0.0
    %546 = vmatprep.subr.mxu0 0.0
    %547 = vmatpush1.xpose.msra.mxu0 0.0
    %548 = vmatprep.subr.mxu0 0.0
    %549 = vmatpush1.xpose.msra.mxu0 0.0
    %550 = vmatprep.subr.mxu0 0.0
    %551 = vmatpush1.xpose.msra.mxu0 0.0
    %552 = vmatprep.subr.mxu0 0.0
    %553 = vmatpush1.xpose.msra.mxu0 0.0
    %554 = vmatprep.subr.mxu0 0.0
    %555 = vmatpush1.xpose.msra.mxu0 0.0
    %556 = vmatprep.subr.mxu0 0.0
    %557 = vmatpush1.xpose.msra.mxu0 0.0
    %558 = vmatprep.subr.mxu0 0.0
    %559 = vmatpush1.xpose.msra.mxu0 0.0
    %560 = vmatprep.subr.mxu0 0.0
    %561 = vmatpush1.xpose.msra.mxu0 0.0
    %562 = vmatprep.subr.mxu0 0.0
    %563 = vmatpush1.xpose.msra.mxu0 %v530
    %564 = vmatprep.subr.mxu0 0.0
    %565 = vmatpush2.xpose.msra.mxu0 0.0
    %566 = vmatprep.subr.mxu0 0.0
    %567 = vmatpush2.xpose.msra.mxu0 0.0
    %568 = vmatprep.subr.mxu0 0.0
    %569 = vmatpush2.xpose.msra.mxu0 0.0
    %570 = vmatprep.subr.mxu0 0.0
    %571 = vmatpush2.xpose.msra.mxu0 0.0
    %572 = vmatprep.subr.mxu0 0.0
    %573 = vmatpush2.xpose.msra.mxu0 0.0
    %574 = vmatprep.subr.mxu0 0.0
    %575 = vmatpush2.xpose.msra.mxu0 0.0
    %576 = vmatprep.subr.mxu0 0.0
    %577 = vmatpush2.xpose.msra.mxu0 0.0
    %578 = vmatprep.subr.mxu0 0.0
    %579 = vmatpush2.xpose.msra.mxu0 0.0
    %580 = vmatprep.subr.mxu0 0.0
    %581 = vmatpush2.xpose.msra.mxu0 0.0
    %582 = vmatprep.subr.mxu0 0.0
    %583 = vmatpush2.xpose.msra.mxu0 0.0
    %584 = vmatprep.subr.mxu0 0.0
    %585 = vmatpush2.xpose.msra.mxu0 0.0
    %586 = vmatprep.subr.mxu0 0.0
    %587 = vmatpush2.xpose.msra.mxu0 0.0
    %588 = vmatprep.subr.mxu0 0.0
    %589 = vmatpush2.xpose.msra.mxu0 0.0
    %590 = vmatprep.subr.mxu0 0.0
    %591 = vmatpush2.xpose.msra.mxu0 0.0
    %592 = vmatprep.subr.mxu0 0.0
    %593 = vmatpush2.xpose.msra.mxu0 0.0
    %594 = vmatprep.subr.mxu0 0.0
    %595 = vmatpush2.xpose.msra.mxu0 0.0
    %596 = vmatprep.mubr.f32.mxu0 0.0
    %597 = vmatmul.mubr.f32.gmra.mxu0 %v528
    %v598 = vpop.f32.mrf.mxu0
    %v599 = vadd.f32 0.0, %v598
    %v600 = vpop.f32.mrf.mxu0
    %601 = vdwg.mxu0
    %602 = vrot.lane.b32.xlu0 %v200, 96
    %v603 = vpop.permute.xlu0 %602
    %v605 = vsel %vm218, %v213, 0
    %v607 = vsel %vm218, %v603, 0
    %609 = vmatprep.subr.mxu0 0.0
    %610 = vmatpush1.xpose.msra.mxu0 0.0
    %611 = vmatprep.subr.mxu0 0.0
    %612 = vmatpush1.xpose.msra.mxu0 0.0
    %613 = vmatprep.subr.mxu0 0.0
    %614 = vmatpush1.xpose.msra.mxu0 0.0
    %615 = vmatprep.subr.mxu0 0.0
    %616 = vmatpush1.xpose.msra.mxu0 0.0
    %617 = vmatprep.subr.mxu0 0.0
    %618 = vmatpush1.xpose.msra.mxu0 0.0
    %619 = vmatprep.subr.mxu0 0.0
    %620 = vmatpush1.xpose.msra.mxu0 0.0
    %621 = vmatprep.subr.mxu0 0.0
    %622 = vmatpush1.xpose.msra.mxu0 0.0
    %623 = vmatprep.subr.mxu0 0.0
    %624 = vmatpush1.xpose.msra.mxu0 0.0
    %625 = vmatprep.subr.mxu0 0.0
    %626 = vmatpush1.xpose.msra.mxu0 0.0
    %627 = vmatprep.subr.mxu0 0.0
    %628 = vmatpush1.xpose.msra.mxu0 0.0
    %629 = vmatprep.subr.mxu0 0.0
    %630 = vmatpush1.xpose.msra.mxu0 0.0
    %631 = vmatprep.subr.mxu0 0.0
    %632 = vmatpush1.xpose.msra.mxu0 0.0
    %633 = vmatprep.subr.mxu0 0.0
    %634 = vmatpush1.xpose.msra.mxu0 0.0
    %635 = vmatprep.subr.mxu0 0.0
    %636 = vmatpush1.xpose.msra.mxu0 0.0
    %637 = vmatprep.subr.mxu0 0.0
    %638 = vmatpush1.xpose.msra.mxu0 0.0
    %639 = vmatprep.subr.mxu0 0.0
    %640 = vmatpush1.xpose.msra.mxu0 %v607
    %641 = vmatprep.subr.mxu0 0.0
    %642 = vmatpush2.xpose.msra.mxu0 0.0
    %643 = vmatprep.subr.mxu0 0.0
    %644 = vmatpush2.xpose.msra.mxu0 0.0
    %645 = vmatprep.subr.mxu0 0.0
    %646 = vmatpush2.xpose.msra.mxu0 0.0
    %647 = vmatprep.subr.mxu0 0.0
    %648 = vmatpush2.xpose.msra.mxu0 0.0
    %649 = vmatprep.subr.mxu0 0.0
    %650 = vmatpush2.xpose.msra.mxu0 0.0
    %651 = vmatprep.subr.mxu0 0.0
    %652 = vmatpush2.xpose.msra.mxu0 0.0
    %653 = vmatprep.subr.mxu0 0.0
    %654 = vmatpush2.xpose.msra.mxu0 0.0
    %655 = vmatprep.subr.mxu0 0.0
    %656 = vmatpush2.xpose.msra.mxu0 0.0
    %657 = vmatprep.subr.mxu0 0.0
    %658 = vmatpush2.xpose.msra.mxu0 0.0
    %659 = vmatprep.subr.mxu0 0.0
    %660 = vmatpush2.xpose.msra.mxu0 0.0
    %661 = vmatprep.subr.mxu0 0.0
    %662 = vmatpush2.xpose.msra.mxu0 0.0
    %663 = vmatprep.subr.mxu0 0.0
    %664 = vmatpush2.xpose.msra.mxu0 0.0
    %665 = vmatprep.subr.mxu0 0.0
    %666 = vmatpush2.xpose.msra.mxu0 0.0
    %667 = vmatprep.subr.mxu0 0.0
    %668 = vmatpush2.xpose.msra.mxu0 0.0
    %669 = vmatprep.subr.mxu0 0.0
    %670 = vmatpush2.xpose.msra.mxu0 0.0
    %671 = vmatprep.subr.mxu0 0.0
    %672 = vmatpush2.xpose.msra.mxu0 0.0
    %673 = vmatprep.mubr.f32.mxu0 0.0
    %674 = vmatmul.mubr.f32.gmra.mxu0 %v605
    %v675 = vpop.f32.mrf.mxu0
    %v676 = vadd.f32 0.0, %v675
    %v677 = vpop.f32.mrf.mxu0
    %678 = vdwg.mxu0
    %679 = vrot.lane.b32.xlu0 %v203, 96
    %v680 = vpop.permute.xlu0 %679
    %v682 = vsel %vm218, %v214, 0
    %v684 = vsel %vm218, %v680, 0
    %686 = vmatprep.subr.mxu0 0.0
    %687 = vmatpush1.xpose.msra.mxu0 0.0
    %688 = vmatprep.subr.mxu0 0.0
    %689 = vmatpush1.xpose.msra.mxu0 0.0
    %690 = vmatprep.subr.mxu0 0.0
    %691 = vmatpush1.xpose.msra.mxu0 0.0
    %692 = vmatprep.subr.mxu0 0.0
    %693 = vmatpush1.xpose.msra.mxu0 0.0
    %694 = vmatprep.subr.mxu0 0.0
    %695 = vmatpush1.xpose.msra.mxu0 0.0
    %696 = vmatprep.subr.mxu0 0.0
    %697 = vmatpush1.xpose.msra.mxu0 0.0
    %698 = vmatprep.subr.mxu0 0.0
    %699 = vmatpush1.xpose.msra.mxu0 0.0
    %700 = vmatprep.subr.mxu0 0.0
    %701 = vmatpush1.xpose.msra.mxu0 0.0
    %702 = vmatprep.subr.mxu0 0.0
    %703 = vmatpush1.xpose.msra.mxu0 0.0
    %704 = vmatprep.subr.mxu0 0.0
    %705 = vmatpush1.xpose.msra.mxu0 0.0
    %706 = vmatprep.subr.mxu0 0.0
    %707 = vmatpush1.xpose.msra.mxu0 0.0
    %708 = vmatprep.subr.mxu0 0.0
    %709 = vmatpush1.xpose.msra.mxu0 0.0
    %710 = vmatprep.subr.mxu0 0.0
    %711 = vmatpush1.xpose.msra.mxu0 0.0
    %712 = vmatprep.subr.mxu0 0.0
    %713 = vmatpush1.xpose.msra.mxu0 0.0
    %714 = vmatprep.subr.mxu0 0.0
    %715 = vmatpush1.xpose.msra.mxu0 0.0
    %716 = vmatprep.subr.mxu0 0.0
    %717 = vmatpush1.xpose.msra.mxu0 %v684
    %718 = vmatprep.subr.mxu0 0.0
    %719 = vmatpush2.xpose.msra.mxu0 0.0
    %720 = vmatprep.subr.mxu0 0.0
    %721 = vmatpush2.xpose.msra.mxu0 0.0
    %722 = vmatprep.subr.mxu0 0.0
    %723 = vmatpush2.xpose.msra.mxu0 0.0
    %724 = vmatprep.subr.mxu0 0.0
    %725 = vmatpush2.xpose.msra.mxu0 0.0
    %726 = vmatprep.subr.mxu0 0.0
    %727 = vmatpush2.xpose.msra.mxu0 0.0
    %728 = vmatprep.subr.mxu0 0.0
    %729 = vmatpush2.xpose.msra.mxu0 0.0
    %730 = vmatprep.subr.mxu0 0.0
    %731 = vmatpush2.xpose.msra.mxu0 0.0
    %732 = vmatprep.subr.mxu0 0.0
    %733 = vmatpush2.xpose.msra.mxu0 0.0
    %734 = vmatprep.subr.mxu0 0.0
    %735 = vmatpush2.xpose.msra.mxu0 0.0
    %736 = vmatprep.subr.mxu0 0.0
    %737 = vmatpush2.xpose.msra.mxu0 0.0
    %738 = vmatprep.subr.mxu0 0.0
    %739 = vmatpush2.xpose.msra.mxu0 0.0
    %740 = vmatprep.subr.mxu0 0.0
    %741 = vmatpush2.xpose.msra.mxu0 0.0
    %742 = vmatprep.subr.mxu0 0.0
    %743 = vmatpush2.xpose.msra.mxu0 0.0
    %744 = vmatprep.subr.mxu0 0.0
    %745 = vmatpush2.xpose.msra.mxu0 0.0
    %746 = vmatprep.subr.mxu0 0.0
    %747 = vmatpush2.xpose.msra.mxu0 0.0
    %748 = vmatprep.subr.mxu0 0.0
    %749 = vmatpush2.xpose.msra.mxu0 0.0
    %750 = vmatprep.mubr.f32.mxu0 0.0
    %751 = vmatmul.mubr.f32.gmra.mxu0 %v682
    %v752 = vpop.f32.mrf.mxu0
    %v753 = vadd.f32 0.0, %v752
    %v754 = vpop.f32.mrf.mxu0
    %755 = vdwg.mxu0
    %756 = vrot.lane.b32.xlu0 %v206, 96
    %v757 = vpop.permute.xlu0 %756
    %v759 = vsel %vm218, %v215, 0
    %v761 = vsel %vm218, %v757, 0
    %763 = vmatprep.subr.mxu0 0.0
    %764 = vmatpush1.xpose.msra.mxu0 0.0
    %765 = vmatprep.subr.mxu0 0.0
    %766 = vmatpush1.xpose.msra.mxu0 0.0
    %767 = vmatprep.subr.mxu0 0.0
    %768 = vmatpush1.xpose.msra.mxu0 0.0
    %769 = vmatprep.subr.mxu0 0.0
    %770 = vmatpush1.xpose.msra.mxu0 0.0
    %771 = vmatprep.subr.mxu0 0.0
    %772 = vmatpush1.xpose.msra.mxu0 0.0
    %773 = vmatprep.subr.mxu0 0.0
    %774 = vmatpush1.xpose.msra.mxu0 0.0
    %775 = vmatprep.subr.mxu0 0.0
    %776 = vmatpush1.xpose.msra.mxu0 0.0
    %777 = vmatprep.subr.mxu0 0.0
    %778 = vmatpush1.xpose.msra.mxu0 0.0
    %779 = vmatprep.subr.mxu0 0.0
    %780 = vmatpush1.xpose.msra.mxu0 0.0
    %781 = vmatprep.subr.mxu0 0.0
    %782 = vmatpush1.xpose.msra.mxu0 0.0
    %783 = vmatprep.subr.mxu0 0.0
    %784 = vmatpush1.xpose.msra.mxu0 0.0
    %785 = vmatprep.subr.mxu0 0.0
    %786 = vmatpush1.xpose.msra.mxu0 0.0
    %787 = vmatprep.subr.mxu0 0.0
    %788 = vmatpush1.xpose.msra.mxu0 0.0
    %789 = vmatprep.subr.mxu0 0.0
    %790 = vmatpush1.xpose.msra.mxu0 0.0
    %791 = vmatprep.subr.mxu0 0.0
    %792 = vmatpush1.xpose.msra.mxu0 0.0
    %793 = vmatprep.subr.mxu0 0.0
    %794 = vmatpush1.xpose.msra.mxu0 %v761
    %795 = vmatprep.subr.mxu0 0.0
    %796 = vmatpush2.xpose.msra.mxu0 0.0
    %797 = vmatprep.subr.mxu0 0.0
    %798 = vmatpush2.xpose.msra.mxu0 0.0
    %799 = vmatprep.subr.mxu0 0.0
    %800 = vmatpush2.xpose.msra.mxu0 0.0
    %801 = vmatprep.subr.mxu0 0.0
    %802 = vmatpush2.xpose.msra.mxu0 0.0
    %803 = vmatprep.subr.mxu0 0.0
    %804 = vmatpush2.xpose.msra.mxu0 0.0
    %805 = vmatprep.subr.mxu0 0.0
    %806 = vmatpush2.xpose.msra.mxu0 0.0
    %807 = vmatprep.subr.mxu0 0.0
    %808 = vmatpush2.xpose.msra.mxu0 0.0
    %809 = vmatprep.subr.mxu0 0.0
    %810 = vmatpush2.xpose.msra.mxu0 0.0
    %811 = vmatprep.subr.mxu0 0.0
    %812 = vmatpush2.xpose.msra.mxu0 0.0
    %813 = vmatprep.subr.mxu0 0.0
    %814 = vmatpush2.xpose.msra.mxu0 0.0
    %815 = vmatprep.subr.mxu0 0.0
    %816 = vmatpush2.xpose.msra.mxu0 0.0
    %817 = vmatprep.subr.mxu0 0.0
    %818 = vmatpush2.xpose.msra.mxu0 0.0
    %819 = vmatprep.subr.mxu0 0.0
    %820 = vmatpush2.xpose.msra.mxu0 0.0
    %821 = vmatprep.subr.mxu0 0.0
    %822 = vmatpush2.xpose.msra.mxu0 0.0
    %823 = vmatprep.subr.mxu0 0.0
    %824 = vmatpush2.xpose.msra.mxu0 0.0
    %825 = vmatprep.subr.mxu0 0.0
    %826 = vmatpush2.xpose.msra.mxu0 0.0
    %827 = vmatprep.mubr.f32.mxu0 0.0
    %828 = vmatmul.mubr.f32.gmra.mxu0 %v759
    %v829 = vpop.f32.mrf.mxu0
    %v830 = vadd.f32 0.0, %v829
    %v831 = vpop.f32.mrf.mxu0
    %832 = vdwg.mxu0
    %v833 = vsel %vm218, %v291, -inf
    %834 = vmax.xlane.f32.xlu0 %v833
    %v835 = vpop.xlane.xlu0 %834
    %v836 = vsel %vm218, %v368, -inf
    %837 = vmax.xlane.f32.xlu0 %v836
    %v838 = vpop.xlane.xlu0 %837
    %v839 = vsel %vm218, %v445, -inf
    %840 = vmax.xlane.f32.xlu0 %v839
    %v841 = vpop.xlane.xlu0 %840
    %v842 = vsel %vm218, %v522, -inf
    %843 = vmax.xlane.f32.xlu0 %v842
    %v844 = vpop.xlane.xlu0 %843
    %v845 = vsel %vm218, %v599, -inf
    %846 = vmax.xlane.f32.xlu0 %v845
    %v847 = vpop.xlane.xlu0 %846
    %v848 = vsel %vm218, %v676, -inf
    %849 = vmax.xlane.f32.xlu0 %v848
    %v850 = vpop.xlane.xlu0 %849
    %v851 = vsel %vm218, %v753, -inf
    %852 = vmax.xlane.f32.xlu0 %v851
    %v853 = vpop.xlane.xlu0 %852
    %v854 = vsel %vm218, %v830, -inf
    %855 = vmax.xlane.f32.xlu0 %v854
    %v856 = vpop.xlane.xlu0 %855
    %v857 = vsub.f32 %v291, %v835
    %v858 = vsub.f32 %v368, %v838
    %v859 = vsub.f32 %v445, %v841
    %v860 = vsub.f32 %v522, %v844
    %v861 = vsub.f32 %v599, %v847
    %v862 = vsub.f32 %v676, %v850
    %v863 = vsub.f32 %v753, %v853
    %v864 = vsub.f32 %v830, %v856
    %v865 = vmul.f32 %v857, 1.442695
    %v866 = vpow.pop %v865
    %v867 = vmul.f32 %v858, 1.442695
    %v868 = vpow.pop %v867
    %v869 = vmul.f32 %v859, 1.442695
    %v870 = vpow.pop %v869
    %v871 = vmul.f32 %v860, 1.442695
    %v872 = vpow.pop %v871
    %v873 = vmul.f32 %v861, 1.442695
    %v874 = vpow.pop %v873
    %v875 = vmul.f32 %v862, 1.442695
    %v876 = vpow.pop %v875
    %v877 = vmul.f32 %v863, 1.442695
    %v878 = vpow.pop %v877
    %v879 = vmul.f32 %v864, 1.442695
    %v880 = vpow.pop %v879
    %v881 = vsel %vm218, %v866, 0.0
    %882 = vadd.xlane.f32.xlu0 %v881
    %v883 = vpop.xlane.xlu0 %882
    %v884 = vsel %vm218, %v868, 0.0
    %885 = vadd.xlane.f32.xlu0 %v884
    %v886 = vpop.xlane.xlu0 %885
    %v887 = vsel %vm218, %v870, 0.0
    %888 = vadd.xlane.f32.xlu0 %v887
    %v889 = vpop.xlane.xlu0 %888
    %v890 = vsel %vm218, %v872, 0.0
    %891 = vadd.xlane.f32.xlu0 %v890
    %v892 = vpop.xlane.xlu0 %891
    %v893 = vsel %vm218, %v874, 0.0
    %894 = vadd.xlane.f32.xlu0 %v893
    %v895 = vpop.xlane.xlu0 %894
    %v896 = vsel %vm218, %v876, 0.0
    %897 = vadd.xlane.f32.xlu0 %v896
    %v898 = vpop.xlane.xlu0 %897
    %v899 = vsel %vm218, %v878, 0.0
    %900 = vadd.xlane.f32.xlu0 %v899
    %v901 = vpop.xlane.xlu0 %900
    %v902 = vsel %vm218, %v880, 0.0
    %903 = vadd.xlane.f32.xlu0 %v902
    %v904 = vpop.xlane.xlu0 %903
    %v905 = vrcp.pop %v883
    %v906 = vmul.f32 %v866, %v905
    %v907 = vrcp.pop %v886
    %v908 = vmul.f32 %v868, %v907
    %v909 = vrcp.pop %v889
    %v910 = vmul.f32 %v870, %v909
    %v911 = vrcp.pop %v892
    %v912 = vmul.f32 %v872, %v911
    %v913 = vrcp.pop %v895
    %v914 = vmul.f32 %v874, %v913
    %v915 = vrcp.pop %v898
    %v916 = vmul.f32 %v876, %v915
    %v917 = vrcp.pop %v901
    %v918 = vmul.f32 %v878, %v917
    %v919 = vrcp.pop %v904
    %v920 = vmul.f32 %v880, %v919
    %921 = vrot.lane.b32.xlu0 %v180, 64
    %v922 = vpop.permute.xlu0 %921
    %v925 = vsel %vm218, %v906, 0
    %927 = vmatprep.subr.mxu0 0.0
    %928 = vmatpush1.msra.mxu0 0.0
    %929 = vmatprep.subr.mxu0 0.0
    %930 = vmatpush1.msra.mxu0 0.0
    %931 = vmatprep.subr.mxu0 0.0
    %932 = vmatpush1.msra.mxu0 0.0
    %933 = vmatprep.subr.mxu0 0.0
    %934 = vmatpush1.msra.mxu0 0.0
    %935 = vmatprep.subr.mxu0 0.0
    %936 = vmatpush1.msra.mxu0 0.0
    %937 = vmatprep.subr.mxu0 0.0
    %938 = vmatpush1.msra.mxu0 0.0
    %939 = vmatprep.subr.mxu0 0.0
    %940 = vmatpush1.msra.mxu0 0.0
    %941 = vmatprep.subr.mxu0 0.0
    %942 = vmatpush1.msra.mxu0 0.0
    %943 = vmatprep.subr.mxu0 0.0
    %944 = vmatpush1.msra.mxu0 0.0
    %945 = vmatprep.subr.mxu0 0.0
    %946 = vmatpush1.msra.mxu0 0.0
    %947 = vmatprep.subr.mxu0 0.0
    %948 = vmatpush1.msra.mxu0 0.0
    %949 = vmatprep.subr.mxu0 0.0
    %950 = vmatpush1.msra.mxu0 0.0
    %951 = vmatprep.subr.mxu0 0.0
    %952 = vmatpush1.msra.mxu0 0.0
    %953 = vmatprep.subr.mxu0 0.0
    %954 = vmatpush1.msra.mxu0 0.0
    %955 = vmatprep.subr.mxu0 0.0
    %956 = vmatpush1.msra.mxu0 0.0
    %957 = vmatprep.subr.mxu0 0.0
    %958 = vmatpush1.msra.mxu0 %v922
    %959 = vmatprep.subr.mxu0 0.0
    %960 = vmatpush2.msra.mxu0 0.0
    %961 = vmatprep.subr.mxu0 0.0
    %962 = vmatpush2.msra.mxu0 0.0
    %963 = vmatprep.subr.mxu0 0.0
    %964 = vmatpush2.msra.mxu0 0.0
    %965 = vmatprep.subr.mxu0 0.0
    %966 = vmatpush2.msra.mxu0 0.0
    %967 = vmatprep.subr.mxu0 0.0
    %968 = vmatpush2.msra.mxu0 0.0
    %969 = vmatprep.subr.mxu0 0.0
    %970 = vmatpush2.msra.mxu0 0.0
    %971 = vmatprep.subr.mxu0 0.0
    %972 = vmatpush2.msra.mxu0 0.0
    %973 = vmatprep.subr.mxu0 0.0
    %974 = vmatpush2.msra.mxu0 0.0
    %975 = vmatprep.subr.mxu0 0.0
    %976 = vmatpush2.msra.mxu0 0.0
    %977 = vmatprep.subr.mxu0 0.0
    %978 = vmatpush2.msra.mxu0 0.0
    %979 = vmatprep.subr.mxu0 0.0
    %980 = vmatpush2.msra.mxu0 0.0
    %981 = vmatprep.subr.mxu0 0.0
    %982 = vmatpush2.msra.mxu0 0.0
    %983 = vmatprep.subr.mxu0 0.0
    %984 = vmatpush2.msra.mxu0 0.0
    %985 = vmatprep.subr.mxu0 0.0
    %986 = vmatpush2.msra.mxu0 0.0
    %987 = vmatprep.subr.mxu0 0.0
    %988 = vmatpush2.msra.mxu0 0.0
    %989 = vmatprep.subr.mxu0 0.0
    %990 = vmatpush2.msra.mxu0 0.0
    %991 = vmatprep.mubr.f32.mxu0 0.0
    %992 = vmatmul.mubr.f32.gmra.mxu0 %v925
    %v993 = vpop.f32.mrf.mxu0
    %v994 = vadd.f32 0.0, %v993
    %v995 = vpop.f32.mrf.mxu0
    %996 = vdwg.mxu0
    %997 = vrot.lane.b32.xlu0 %v185, 64
    %v998 = vpop.permute.xlu0 %997
    %v1001 = vsel %vm218, %v908, 0
    %1003 = vmatprep.subr.mxu0 0.0
    %1004 = vmatpush1.msra.mxu0 0.0
    %1005 = vmatprep.subr.mxu0 0.0
    %1006 = vmatpush1.msra.mxu0 0.0
    %1007 = vmatprep.subr.mxu0 0.0
    %1008 = vmatpush1.msra.mxu0 0.0
    %1009 = vmatprep.subr.mxu0 0.0
    %1010 = vmatpush1.msra.mxu0 0.0
    %1011 = vmatprep.subr.mxu0 0.0
    %1012 = vmatpush1.msra.mxu0 0.0
    %1013 = vmatprep.subr.mxu0 0.0
    %1014 = vmatpush1.msra.mxu0 0.0
    %1015 = vmatprep.subr.mxu0 0.0
    %1016 = vmatpush1.msra.mxu0 0.0
    %1017 = vmatprep.subr.mxu0 0.0
    %1018 = vmatpush1.msra.mxu0 0.0
    %1019 = vmatprep.subr.mxu0 0.0
    %1020 = vmatpush1.msra.mxu0 0.0
    %1021 = vmatprep.subr.mxu0 0.0
    %1022 = vmatpush1.msra.mxu0 0.0
    %1023 = vmatprep.subr.mxu0 0.0
    %1024 = vmatpush1.msra.mxu0 0.0
    %1025 = vmatprep.subr.mxu0 0.0
    %1026 = vmatpush1.msra.mxu0 0.0
    %1027 = vmatprep.subr.mxu0 0.0
    %1028 = vmatpush1.msra.mxu0 0.0
    %1029 = vmatprep.subr.mxu0 0.0
    %1030 = vmatpush1.msra.mxu0 0.0
    %1031 = vmatprep.subr.mxu0 0.0
    %1032 = vmatpush1.msra.mxu0 0.0
    %1033 = vmatprep.subr.mxu0 0.0
    %1034 = vmatpush1.msra.mxu0 %v998
    %1035 = vmatprep.subr.mxu0 0.0
    %1036 = vmatpush2.msra.mxu0 0.0
    %1037 = vmatprep.subr.mxu0 0.0
    %1038 = vmatpush2.msra.mxu0 0.0
    %1039 = vmatprep.subr.mxu0 0.0
    %1040 = vmatpush2.msra.mxu0 0.0
    %1041 = vmatprep.subr.mxu0 0.0
    %1042 = vmatpush2.msra.mxu0 0.0
    %1043 = vmatprep.subr.mxu0 0.0
    %1044 = vmatpush2.msra.mxu0 0.0
    %1045 = vmatprep.subr.mxu0 0.0
    %1046 = vmatpush2.msra.mxu0 0.0
    %1047 = vmatprep.subr.mxu0 0.0
    %1048 = vmatpush2.msra.mxu0 0.0
    %1049 = vmatprep.subr.mxu0 0.0
    %1050 = vmatpush2.msra.mxu0 0.0
    %1051 = vmatprep.subr.mxu0 0.0
    %1052 = vmatpush2.msra.mxu0 0.0
    %1053 = vmatprep.subr.mxu0 0.0
    %1054 = vmatpush2.msra.mxu0 0.0
    %1055 = vmatprep.subr.mxu0 0.0
    %1056 = vmatpush2.msra.mxu0 0.0
    %1057 = vmatprep.subr.mxu0 0.0
    %1058 = vmatpush2.msra.mxu0 0.0
    %1059 = vmatprep.subr.mxu0 0.0
    %1060 = vmatpush2.msra.mxu0 0.0
    %1061 = vmatprep.subr.mxu0 0.0
    %1062 = vmatpush2.msra.mxu0 0.0
    %1063 = vmatprep.subr.mxu0 0.0
    %1064 = vmatpush2.msra.mxu0 0.0
    %1065 = vmatprep.subr.mxu0 0.0
    %1066 = vmatpush2.msra.mxu0 0.0
    %1067 = vmatprep.mubr.f32.mxu0 0.0
    %1068 = vmatmul.mubr.f32.gmra.mxu0 %v1001
    %v1069 = vpop.f32.mrf.mxu0
    %v1070 = vadd.f32 0.0, %v1069
    %v1071 = vpop.f32.mrf.mxu0
    %1072 = vdwg.mxu0
    %1073 = vrot.lane.b32.xlu0 %v190, 64
    %v1074 = vpop.permute.xlu0 %1073
    %v1077 = vsel %vm218, %v910, 0
    %1079 = vmatprep.subr.mxu0 0.0
    %1080 = vmatpush1.msra.mxu0 0.0
    %1081 = vmatprep.subr.mxu0 0.0
    %1082 = vmatpush1.msra.mxu0 0.0
    %1083 = vmatprep.subr.mxu0 0.0
    %1084 = vmatpush1.msra.mxu0 0.0
    %1085 = vmatprep.subr.mxu0 0.0
    %1086 = vmatpush1.msra.mxu0 0.0
    %1087 = vmatprep.subr.mxu0 0.0
    %1088 = vmatpush1.msra.mxu0 0.0
    %1089 = vmatprep.subr.mxu0 0.0
    %1090 = vmatpush1.msra.mxu0 0.0
    %1091 = vmatprep.subr.mxu0 0.0
    %1092 = vmatpush1.msra.mxu0 0.0
    %1093 = vmatprep.subr.mxu0 0.0
    %1094 = vmatpush1.msra.mxu0 0.0
    %1095 = vmatprep.subr.mxu0 0.0
    %1096 = vmatpush1.msra.mxu0 0.0
    %1097 = vmatprep.subr.mxu0 0.0
    %1098 = vmatpush1.msra.mxu0 0.0
    %1099 = vmatprep.subr.mxu0 0.0
    %1100 = vmatpush1.msra.mxu0 0.0
    %1101 = vmatprep.subr.mxu0 0.0
    %1102 = vmatpush1.msra.mxu0 0.0
    %1103 = vmatprep.subr.mxu0 0.0
    %1104 = vmatpush1.msra.mxu0 0.0
    %1105 = vmatprep.subr.mxu0 0.0
    %1106 = vmatpush1.msra.mxu0 0.0
    %1107 = vmatprep.subr.mxu0 0.0
    %1108 = vmatpush1.msra.mxu0 0.0
    %1109 = vmatprep.subr.mxu0 0.0
    %1110 = vmatpush1.msra.mxu0 %v1074
    %1111 = vmatprep.subr.mxu0 0.0
    %1112 = vmatpush2.msra.mxu0 0.0
    %1113 = vmatprep.subr.mxu0 0.0
    %1114 = vmatpush2.msra.mxu0 0.0
    %1115 = vmatprep.subr.mxu0 0.0
    %1116 = vmatpush2.msra.mxu0 0.0
    %1117 = vmatprep.subr.mxu0 0.0
    %1118 = vmatpush2.msra.mxu0 0.0
    %1119 = vmatprep.subr.mxu0 0.0
    %1120 = vmatpush2.msra.mxu0 0.0
    %1121 = vmatprep.subr.mxu0 0.0
    %1122 = vmatpush2.msra.mxu0 0.0
    %1123 = vmatprep.subr.mxu0 0.0
    %1124 = vmatpush2.msra.mxu0 0.0
    %1125 = vmatprep.subr.mxu0 0.0
    %1126 = vmatpush2.msra.mxu0 0.0
    %1127 = vmatprep.subr.mxu0 0.0
    %1128 = vmatpush2.msra.mxu0 0.0
    %1129 = vmatprep.subr.mxu0 0.0
    %1130 = vmatpush2.msra.mxu0 0.0
    %1131 = vmatprep.subr.mxu0 0.0
    %1132 = vmatpush2.msra.mxu0 0.0
    %1133 = vmatprep.subr.mxu0 0.0
    %1134 = vmatpush2.msra.mxu0 0.0
    %1135 = vmatprep.subr.mxu0 0.0
    %1136 = vmatpush2.msra.mxu0 0.0
    %1137 = vmatprep.subr.mxu0 0.0
    %1138 = vmatpush2.msra.mxu0 0.0
    %1139 = vmatprep.subr.mxu0 0.0
    %1140 = vmatpush2.msra.mxu0 0.0
    %1141 = vmatprep.subr.mxu0 0.0
    %1142 = vmatpush2.msra.mxu0 0.0
    %1143 = vmatprep.mubr.f32.mxu0 0.0
    %1144 = vmatmul.mubr.f32.gmra.mxu0 %v1077
    %v1145 = vpop.f32.mrf.mxu0
    %v1146 = vadd.f32 0.0, %v1145
    %v1147 = vpop.f32.mrf.mxu0
    %1148 = vdwg.mxu0
    %1149 = vrot.lane.b32.xlu0 %v194, 64
    %v1150 = vpop.permute.xlu0 %1149
    %v1153 = vsel %vm218, %v912, 0
    %1155 = vmatprep.subr.mxu0 0.0
    %1156 = vmatpush1.msra.mxu0 0.0
    %1157 = vmatprep.subr.mxu0 0.0
    %1158 = vmatpush1.msra.mxu0 0.0
    %1159 = vmatprep.subr.mxu0 0.0
    %1160 = vmatpush1.msra.mxu0 0.0
    %1161 = vmatprep.subr.mxu0 0.0
    %1162 = vmatpush1.msra.mxu0 0.0
    %1163 = vmatprep.subr.mxu0 0.0
    %1164 = vmatpush1.msra.mxu0 0.0
    %1165 = vmatprep.subr.mxu0 0.0
    %1166 = vmatpush1.msra.mxu0 0.0
    %1167 = vmatprep.subr.mxu0 0.0
    %1168 = vmatpush1.msra.mxu0 0.0
    %1169 = vmatprep.subr.mxu0 0.0
    %1170 = vmatpush1.msra.mxu0 0.0
    %1171 = vmatprep.subr.mxu0 0.0
    %1172 = vmatpush1.msra.mxu0 0.0
    %1173 = vmatprep.subr.mxu0 0.0
    %1174 = vmatpush1.msra.mxu0 0.0
    %1175 = vmatprep.subr.mxu0 0.0
    %1176 = vmatpush1.msra.mxu0 0.0
    %1177 = vmatprep.subr.mxu0 0.0
    %1178 = vmatpush1.msra.mxu0 0.0
    %1179 = vmatprep.subr.mxu0 0.0
    %1180 = vmatpush1.msra.mxu0 0.0
    %1181 = vmatprep.subr.mxu0 0.0
    %1182 = vmatpush1.msra.mxu0 0.0
    %1183 = vmatprep.subr.mxu0 0.0
    %1184 = vmatpush1.msra.mxu0 0.0
    %1185 = vmatprep.subr.mxu0 0.0
    %1186 = vmatpush1.msra.mxu0 %v1150
    %1187 = vmatprep.subr.mxu0 0.0
    %1188 = vmatpush2.msra.mxu0 0.0
    %1189 = vmatprep.subr.mxu0 0.0
    %1190 = vmatpush2.msra.mxu0 0.0
    %1191 = vmatprep.subr.mxu0 0.0
    %1192 = vmatpush2.msra.mxu0 0.0
    %1193 = vmatprep.subr.mxu0 0.0
    %1194 = vmatpush2.msra.mxu0 0.0
    %1195 = vmatprep.subr.mxu0 0.0
    %1196 = vmatpush2.msra.mxu0 0.0
    %1197 = vmatprep.subr.mxu0 0.0
    %1198 = vmatpush2.msra.mxu0 0.0
    %1199 = vmatprep.subr.mxu0 0.0
    %1200 = vmatpush2.msra.mxu0 0.0
    %1201 = vmatprep.subr.mxu0 0.0
    %1202 = vmatpush2.msra.mxu0 0.0
    %1203 = vmatprep.subr.mxu0 0.0
    %1204 = vmatpush2.msra.mxu0 0.0
    %1205 = vmatprep.subr.mxu0 0.0
    %1206 = vmatpush2.msra.mxu0 0.0
    %1207 = vmatprep.subr.mxu0 0.0
    %1208 = vmatpush2.msra.mxu0 0.0
    %1209 = vmatprep.subr.mxu0 0.0
    %1210 = vmatpush2.msra.mxu0 0.0
    %1211 = vmatprep.subr.mxu0 0.0
    %1212 = vmatpush2.msra.mxu0 0.0
    %1213 = vmatprep.subr.mxu0 0.0
    %1214 = vmatpush2.msra.mxu0 0.0
    %1215 = vmatprep.subr.mxu0 0.0
    %1216 = vmatpush2.msra.mxu0 0.0
    %1217 = vmatprep.subr.mxu0 0.0
    %1218 = vmatpush2.msra.mxu0 0.0
    %1219 = vmatprep.mubr.f32.mxu0 0.0
    %1220 = vmatmul.mubr.f32.gmra.mxu0 %v1153
    %v1221 = vpop.f32.mrf.mxu0
    %v1222 = vadd.f32 0.0, %v1221
    %v1223 = vpop.f32.mrf.mxu0
    %1224 = vdwg.mxu0
    %1225 = vrot.lane.b32.xlu0 %v197, 64
    %v1226 = vpop.permute.xlu0 %1225
    %v1229 = vsel %vm218, %v914, 0
    %1231 = vmatprep.subr.mxu0 0.0
    %1232 = vmatpush1.msra.mxu0 0.0
    %1233 = vmatprep.subr.mxu0 0.0
    %1234 = vmatpush1.msra.mxu0 0.0
    %1235 = vmatprep.subr.mxu0 0.0
    %1236 = vmatpush1.msra.mxu0 0.0
    %1237 = vmatprep.subr.mxu0 0.0
    %1238 = vmatpush1.msra.mxu0 0.0
    %1239 = vmatprep.subr.mxu0 0.0
    %1240 = vmatpush1.msra.mxu0 0.0
    %1241 = vmatprep.subr.mxu0 0.0
    %1242 = vmatpush1.msra.mxu0 0.0
    %1243 = vmatprep.subr.mxu0 0.0
    %1244 = vmatpush1.msra.mxu0 0.0
    %1245 = vmatprep.subr.mxu0 0.0
    %1246 = vmatpush1.msra.mxu0 0.0
    %1247 = vmatprep.subr.mxu0 0.0
    %1248 = vmatpush1.msra.mxu0 0.0
    %1249 = vmatprep.subr.mxu0 0.0
    %1250 = vmatpush1.msra.mxu0 0.0
    %1251 = vmatprep.subr.mxu0 0.0
    %1252 = vmatpush1.msra.mxu0 0.0
    %1253 = vmatprep.subr.mxu0 0.0
    %1254 = vmatpush1.msra.mxu0 0.0
    %1255 = vmatprep.subr.mxu0 0.0
    %1256 = vmatpush1.msra.mxu0 0.0
    %1257 = vmatprep.subr.mxu0 0.0
    %1258 = vmatpush1.msra.mxu0 0.0
    %1259 = vmatprep.subr.mxu0 0.0
    %1260 = vmatpush1.msra.mxu0 0.0
    %1261 = vmatprep.subr.mxu0 0.0
    %1262 = vmatpush1.msra.mxu0 %v1226
    %1263 = vmatprep.subr.mxu0 0.0
    %1264 = vmatpush2.msra.mxu0 0.0
    %1265 = vmatprep.subr.mxu0 0.0
    %1266 = vmatpush2.msra.mxu0 0.0
    %1267 = vmatprep.subr.mxu0 0.0
    %1268 = vmatpush2.msra.mxu0 0.0
    %1269 = vmatprep.subr.mxu0 0.0
    %1270 = vmatpush2.msra.mxu0 0.0
    %1271 = vmatprep.subr.mxu0 0.0
    %1272 = vmatpush2.msra.mxu0 0.0
    %1273 = vmatprep.subr.mxu0 0.0
    %1274 = vmatpush2.msra.mxu0 0.0
    %1275 = vmatprep.subr.mxu0 0.0
    %1276 = vmatpush2.msra.mxu0 0.0
    %1277 = vmatprep.subr.mxu0 0.0
    %1278 = vmatpush2.msra.mxu0 0.0
    %1279 = vmatprep.subr.mxu0 0.0
    %1280 = vmatpush2.msra.mxu0 0.0
    %1281 = vmatprep.subr.mxu0 0.0
    %1282 = vmatpush2.msra.mxu0 0.0
    %1283 = vmatprep.subr.mxu0 0.0
    %1284 = vmatpush2.msra.mxu0 0.0
    %1285 = vmatprep.subr.mxu0 0.0
    %1286 = vmatpush2.msra.mxu0 0.0
    %1287 = vmatprep.subr.mxu0 0.0
    %1288 = vmatpush2.msra.mxu0 0.0
    %1289 = vmatprep.subr.mxu0 0.0
    %1290 = vmatpush2.msra.mxu0 0.0
    %1291 = vmatprep.subr.mxu0 0.0
    %1292 = vmatpush2.msra.mxu0 0.0
    %1293 = vmatprep.subr.mxu0 0.0
    %1294 = vmatpush2.msra.mxu0 0.0
    %1295 = vmatprep.mubr.f32.mxu0 0.0
    %1296 = vmatmul.mubr.f32.gmra.mxu0 %v1229
    %v1297 = vpop.f32.mrf.mxu0
    %v1298 = vadd.f32 0.0, %v1297
    %v1299 = vpop.f32.mrf.mxu0
    %1300 = vdwg.mxu0
    %1301 = vrot.lane.b32.xlu0 %v200, 64
    %v1302 = vpop.permute.xlu0 %1301
    %v1305 = vsel %vm218, %v916, 0
    %1307 = vmatprep.subr.mxu0 0.0
    %1308 = vmatpush1.msra.mxu0 0.0
    %1309 = vmatprep.subr.mxu0 0.0
    %1310 = vmatpush1.msra.mxu0 0.0
    %1311 = vmatprep.subr.mxu0 0.0
    %1312 = vmatpush1.msra.mxu0 0.0
    %1313 = vmatprep.subr.mxu0 0.0
    %1314 = vmatpush1.msra.mxu0 0.0
    %1315 = vmatprep.subr.mxu0 0.0
    %1316 = vmatpush1.msra.mxu0 0.0
    %1317 = vmatprep.subr.mxu0 0.0
    %1318 = vmatpush1.msra.mxu0 0.0
    %1319 = vmatprep.subr.mxu0 0.0
    %1320 = vmatpush1.msra.mxu0 0.0
    %1321 = vmatprep.subr.mxu0 0.0
    %1322 = vmatpush1.msra.mxu0 0.0
    %1323 = vmatprep.subr.mxu0 0.0
    %1324 = vmatpush1.msra.mxu0 0.0
    %1325 = vmatprep.subr.mxu0 0.0
    %1326 = vmatpush1.msra.mxu0 0.0
    %1327 = vmatprep.subr.mxu0 0.0
    %1328 = vmatpush1.msra.mxu0 0.0
    %1329 = vmatprep.subr.mxu0 0.0
    %1330 = vmatpush1.msra.mxu0 0.0
    %1331 = vmatprep.subr.mxu0 0.0
    %1332 = vmatpush1.msra.mxu0 0.0
    %1333 = vmatprep.subr.mxu0 0.0
    %1334 = vmatpush1.msra.mxu0 0.0
    %1335 = vmatprep.subr.mxu0 0.0
    %1336 = vmatpush1.msra.mxu0 0.0
    %1337 = vmatprep.subr.mxu0 0.0
    %1338 = vmatpush1.msra.mxu0 %v1302
    %1339 = vmatprep.subr.mxu0 0.0
    %1340 = vmatpush2.msra.mxu0 0.0
    %1341 = vmatprep.subr.mxu0 0.0
    %1342 = vmatpush2.msra.mxu0 0.0
    %1343 = vmatprep.subr.mxu0 0.0
    %1344 = vmatpush2.msra.mxu0 0.0
    %1345 = vmatprep.subr.mxu0 0.0
    %1346 = vmatpush2.msra.mxu0 0.0
    %1347 = vmatprep.subr.mxu0 0.0
    %1348 = vmatpush2.msra.mxu0 0.0
    %1349 = vmatprep.subr.mxu0 0.0
    %1350 = vmatpush2.msra.mxu0 0.0
    %1351 = vmatprep.subr.mxu0 0.0
    %1352 = vmatpush2.msra.mxu0 0.0
    %1353 = vmatprep.subr.mxu0 0.0
    %1354 = vmatpush2.msra.mxu0 0.0
    %1355 = vmatprep.subr.mxu0 0.0
    %1356 = vmatpush2.msra.mxu0 0.0
    %1357 = vmatprep.subr.mxu0 0.0
    %1358 = vmatpush2.msra.mxu0 0.0
    %1359 = vmatprep.subr.mxu0 0.0
    %1360 = vmatpush2.msra.mxu0 0.0
    %1361 = vmatprep.subr.mxu0 0.0
    %1362 = vmatpush2.msra.mxu0 0.0
    %1363 = vmatprep.subr.mxu0 0.0
    %1364 = vmatpush2.msra.mxu0 0.0
    %1365 = vmatprep.subr.mxu0 0.0
    %1366 = vmatpush2.msra.mxu0 0.0
    %1367 = vmatprep.subr.mxu0 0.0
    %1368 = vmatpush2.msra.mxu0 0.0
    %1369 = vmatprep.subr.mxu0 0.0
    %1370 = vmatpush2.msra.mxu0 0.0
    %1371 = vmatprep.mubr.f32.mxu0 0.0
    %1372 = vmatmul.mubr.f32.gmra.mxu0 %v1305
    %v1373 = vpop.f32.mrf.mxu0
    %v1374 = vadd.f32 0.0, %v1373
    %v1375 = vpop.f32.mrf.mxu0
    %1376 = vdwg.mxu0
    %1377 = vrot.lane.b32.xlu0 %v203, 64
    %v1378 = vpop.permute.xlu0 %1377
    %v1381 = vsel %vm218, %v918, 0
    %1383 = vmatprep.subr.mxu0 0.0
    %1384 = vmatpush1.msra.mxu0 0.0
    %1385 = vmatprep.subr.mxu0 0.0
    %1386 = vmatpush1.msra.mxu0 0.0
    %1387 = vmatprep.subr.mxu0 0.0
    %1388 = vmatpush1.msra.mxu0 0.0
    %1389 = vmatprep.subr.mxu0 0.0
    %1390 = vmatpush1.msra.mxu0 0.0
    %1391 = vmatprep.subr.mxu0 0.0
    %1392 = vmatpush1.msra.mxu0 0.0
    %1393 = vmatprep.subr.mxu0 0.0
    %1394 = vmatpush1.msra.mxu0 0.0
    %1395 = vmatprep.subr.mxu0 0.0
    %1396 = vmatpush1.msra.mxu0 0.0
    %1397 = vmatprep.subr.mxu0 0.0
    %1398 = vmatpush1.msra.mxu0 0.0
    %1399 = vmatprep.subr.mxu0 0.0
    %1400 = vmatpush1.msra.mxu0 0.0
    %1401 = vmatprep.subr.mxu0 0.0
    %1402 = vmatpush1.msra.mxu0 0.0
    %1403 = vmatprep.subr.mxu0 0.0
    %1404 = vmatpush1.msra.mxu0 0.0
    %1405 = vmatprep.subr.mxu0 0.0
    %1406 = vmatpush1.msra.mxu0 0.0
    %1407 = vmatprep.subr.mxu0 0.0
    %1408 = vmatpush1.msra.mxu0 0.0
    %1409 = vmatprep.subr.mxu0 0.0
    %1410 = vmatpush1.msra.mxu0 0.0
    %1411 = vmatprep.subr.mxu0 0.0
    %1412 = vmatpush1.msra.mxu0 0.0
    %1413 = vmatprep.subr.mxu0 0.0
    %1414 = vmatpush1.msra.mxu0 %v1378
    %1415 = vmatprep.subr.mxu0 0.0
    %1416 = vmatpush2.msra.mxu0 0.0
    %1417 = vmatprep.subr.mxu0 0.0
    %1418 = vmatpush2.msra.mxu0 0.0
    %1419 = vmatprep.subr.mxu0 0.0
    %1420 = vmatpush2.msra.mxu0 0.0
    %1421 = vmatprep.subr.mxu0 0.0
    %1422 = vmatpush2.msra.mxu0 0.0
    %1423 = vmatprep.subr.mxu0 0.0
    %1424 = vmatpush2.msra.mxu0 0.0
    %1425 = vmatprep.subr.mxu0 0.0
    %1426 = vmatpush2.msra.mxu0 0.0
    %1427 = vmatprep.subr.mxu0 0.0
    %1428 = vmatpush2.msra.mxu0 0.0
    %1429 = vmatprep.subr.mxu0 0.0
    %1430 = vmatpush2.msra.mxu0 0.0
    %1431 = vmatprep.subr.mxu0 0.0
    %1432 = vmatpush2.msra.mxu0 0.0
    %1433 = vmatprep.subr.mxu0 0.0
    %1434 = vmatpush2.msra.mxu0 0.0
    %1435 = vmatprep.subr.mxu0 0.0
    %1436 = vmatpush2.msra.mxu0 0.0
    %1437 = vmatprep.subr.mxu0 0.0
    %1438 = vmatpush2.msra.mxu0 0.0
    %1439 = vmatprep.subr.mxu0 0.0
    %1440 = vmatpush2.msra.mxu0 0.0
    %1441 = vmatprep.subr.mxu0 0.0
    %1442 = vmatpush2.msra.mxu0 0.0
    %1443 = vmatprep.subr.mxu0 0.0
    %1444 = vmatpush2.msra.mxu0 0.0
    %1445 = vmatprep.subr.mxu0 0.0
    %1446 = vmatpush2.msra.mxu0 0.0
    %1447 = vmatprep.mubr.f32.mxu0 0.0
    %1448 = vmatmul.mubr.f32.gmra.mxu0 %v1381
    %v1449 = vpop.f32.mrf.mxu0
    %v1450 = vadd.f32 0.0, %v1449
    %v1451 = vpop.f32.mrf.mxu0
    %1452 = vdwg.mxu0
    %1453 = vrot.lane.b32.xlu0 %v206, 64
    %v1454 = vpop.permute.xlu0 %1453
    %v1457 = vsel %vm218, %v920, 0
    %1459 = vmatprep.subr.mxu0 0.0
    %1460 = vmatpush1.msra.mxu0 0.0
    %1461 = vmatprep.subr.mxu0 0.0
    %1462 = vmatpush1.msra.mxu0 0.0
    %1463 = vmatprep.subr.mxu0 0.0
    %1464 = vmatpush1.msra.mxu0 0.0
    %1465 = vmatprep.subr.mxu0 0.0
    %1466 = vmatpush1.msra.mxu0 0.0
    %1467 = vmatprep.subr.mxu0 0.0
    %1468 = vmatpush1.msra.mxu0 0.0
    %1469 = vmatprep.subr.mxu0 0.0
    %1470 = vmatpush1.msra.mxu0 0.0
    %1471 = vmatprep.subr.mxu0 0.0
    %1472 = vmatpush1.msra.mxu0 0.0
    %1473 = vmatprep.subr.mxu0 0.0
    %1474 = vmatpush1.msra.mxu0 0.0
    %1475 = vmatprep.subr.mxu0 0.0
    %1476 = vmatpush1.msra.mxu0 0.0
    %1477 = vmatprep.subr.mxu0 0.0
    %1478 = vmatpush1.msra.mxu0 0.0
    %1479 = vmatprep.subr.mxu0 0.0
    %1480 = vmatpush1.msra.mxu0 0.0
    %1481 = vmatprep.subr.mxu0 0.0
    %1482 = vmatpush1.msra.mxu0 0.0
    %1483 = vmatprep.subr.mxu0 0.0
    %1484 = vmatpush1.msra.mxu0 0.0
    %1485 = vmatprep.subr.mxu0 0.0
    %1486 = vmatpush1.msra.mxu0 0.0
    %1487 = vmatprep.subr.mxu0 0.0
    %1488 = vmatpush1.msra.mxu0 0.0
    %1489 = vmatprep.subr.mxu0 0.0
    %1490 = vmatpush1.msra.mxu0 %v1454
    %1491 = vmatprep.subr.mxu0 0.0
    %1492 = vmatpush2.msra.mxu0 0.0
    %1493 = vmatprep.subr.mxu0 0.0
    %1494 = vmatpush2.msra.mxu0 0.0
    %1495 = vmatprep.subr.mxu0 0.0
    %1496 = vmatpush2.msra.mxu0 0.0
    %1497 = vmatprep.subr.mxu0 0.0
    %1498 = vmatpush2.msra.mxu0 0.0
    %1499 = vmatprep.subr.mxu0 0.0
    %1500 = vmatpush2.msra.mxu0 0.0
    %1501 = vmatprep.subr.mxu0 0.0
    %1502 = vmatpush2.msra.mxu0 0.0
    %1503 = vmatprep.subr.mxu0 0.0
    %1504 = vmatpush2.msra.mxu0 0.0
    %1505 = vmatprep.subr.mxu0 0.0
    %1506 = vmatpush2.msra.mxu0 0.0
    %1507 = vmatprep.subr.mxu0 0.0
    %1508 = vmatpush2.msra.mxu0 0.0
    %1509 = vmatprep.subr.mxu0 0.0
    %1510 = vmatpush2.msra.mxu0 0.0
    %1511 = vmatprep.subr.mxu0 0.0
    %1512 = vmatpush2.msra.mxu0 0.0
    %1513 = vmatprep.subr.mxu0 0.0
    %1514 = vmatpush2.msra.mxu0 0.0
    %1515 = vmatprep.subr.mxu0 0.0
    %1516 = vmatpush2.msra.mxu0 0.0
    %1517 = vmatprep.subr.mxu0 0.0
    %1518 = vmatpush2.msra.mxu0 0.0
    %1519 = vmatprep.subr.mxu0 0.0
    %1520 = vmatpush2.msra.mxu0 0.0
    %1521 = vmatprep.subr.mxu0 0.0
    %1522 = vmatpush2.msra.mxu0 0.0
    %1523 = vmatprep.mubr.f32.mxu0 0.0
    %1524 = vmatmul.mubr.f32.gmra.mxu0 %v1457
    %v1525 = vpop.f32.mrf.mxu0
    %v1526 = vadd.f32 0.0, %v1525
    %v1527 = vpop.f32.mrf.mxu0
    %1528 = vdwg.mxu0
    %1530 = vrot.lane.b32.xlu0 %v1146, 8
    %v1531 = vpop.permute.xlu0 %1530
    %1534 = vrot.lane.b32.xlu0 %v1298, 16
    %v1535 = vpop.permute.xlu0 %1534
    %1538 = vrot.lane.b32.xlu0 %v1450, 24
    %v1539 = vpop.permute.xlu0 %1538
    %v1541 = vsel %vm218, %v994, %v1531
    %vm1542 = vcmask 130048
    %v1543 = vsel %vm1542, %v1541, %v1535
    %vm1544 = vcmask 195584
    %v1545 = vsel %vm1544, %v1543, %v1539
    %1547 = vrot.lane.b32.xlu0 %v1222, 8
    %v1548 = vpop.permute.xlu0 %1547
    %1551 = vrot.lane.b32.xlu0 %v1374, 16
    %v1552 = vpop.permute.xlu0 %1551
    %1555 = vrot.lane.b32.xlu0 %v1526, 24
    %v1556 = vpop.permute.xlu0 %1555
    %v1558 = vsel %vm218, %v1070, %v1548
    %v1559 = vsel %vm1542, %v1558, %v1552
    %v1560 = vsel %vm1544, %v1559, %v1556
    %v1561 = vld [vmem:[%s5] sm:$0xff]
    %v1562 = vld [vmem:[%s5 + $0x8] sm:$0xff]
    %v1563 = vld [vmem:[%s5 + $0x10] sm:$0xff]
    %v1564 = vld [vmem:[%s5 + $0x18] sm:$0xff]
    %v1565 = vld [vmem:[%s6] sm:$0x1]
    %v1567 = vlaneseq
    %v1568 = vshrl.u32 %v1567, 7
    %v1569 = vsub.s32 0, %v1568
    %v1570 = vrot.slane %v1565, %v1569
    %v1573 = vsel %vm49, %v1545, 0
    %v1576 = vsel %vm49, %v1560, 0
    %1578 = vmatprep.subr.mxu0 0.0
    %1579 = vmatpush1.msra.mxu0 0.0
    %1580 = vmatprep.subr.mxu0 0.0
    %1581 = vmatpush1.msra.mxu0 0.0
    %1582 = vmatprep.subr.mxu0 0.0
    %1583 = vmatpush1.msra.mxu0 0.0
    %1584 = vmatprep.subr.mxu0 0.0
    %1585 = vmatpush1.msra.mxu0 0.0
    %1586 = vmatprep.subr.mxu0 0.0
    %1587 = vmatpush1.msra.mxu0 0.0
    %1588 = vmatprep.subr.mxu0 0.0
    %1589 = vmatpush1.msra.mxu0 0.0
    %1590 = vmatprep.subr.mxu0 0.0
    %1591 = vmatpush1.msra.mxu0 0.0
    %1592 = vmatprep.subr.mxu0 0.0
    %1593 = vmatpush1.msra.mxu0 0.0
    %1594 = vmatprep.subr.mxu0 0.0
    %1595 = vmatpush1.msra.mxu0 0.0
    %1596 = vmatprep.subr.mxu0 0.0
    %1597 = vmatpush1.msra.mxu0 0.0
    %1598 = vmatprep.subr.mxu0 0.0
    %1599 = vmatpush1.msra.mxu0 0.0
    %1600 = vmatprep.subr.mxu0 0.0
    %1601 = vmatpush1.msra.mxu0 0.0
    %1602 = vmatprep.subr.mxu0 0.0
    %1603 = vmatpush1.msra.mxu0 %v1564
    %1604 = vmatprep.subr.mxu0 0.0
    %1605 = vmatpush1.msra.mxu0 %v1563
    %1606 = vmatprep.subr.mxu0 0.0
    %1607 = vmatpush1.msra.mxu0 %v1562
    %1608 = vmatprep.subr.mxu0 0.0
    %1609 = vmatpush1.msra.mxu0 %v1561
    %1610 = vmatprep.subr.mxu0 0.0
    %1611 = vmatpush2.msra.mxu0 0.0
    %1612 = vmatprep.subr.mxu0 0.0
    %1613 = vmatpush2.msra.mxu0 0.0
    %1614 = vmatprep.subr.mxu0 0.0
    %1615 = vmatpush2.msra.mxu0 0.0
    %1616 = vmatprep.subr.mxu0 0.0
    %1617 = vmatpush2.msra.mxu0 0.0
    %1618 = vmatprep.subr.mxu0 0.0
    %1619 = vmatpush2.msra.mxu0 0.0
    %1620 = vmatprep.subr.mxu0 0.0
    %1621 = vmatpush2.msra.mxu0 0.0
    %1622 = vmatprep.subr.mxu0 0.0
    %1623 = vmatpush2.msra.mxu0 0.0
    %1624 = vmatprep.subr.mxu0 0.0
    %1625 = vmatpush2.msra.mxu0 0.0
    %1626 = vmatprep.subr.mxu0 0.0
    %1627 = vmatpush2.msra.mxu0 0.0
    %1628 = vmatprep.subr.mxu0 0.0
    %1629 = vmatpush2.msra.mxu0 0.0
    %1630 = vmatprep.subr.mxu0 0.0
    %1631 = vmatpush2.msra.mxu0 0.0
    %1632 = vmatprep.subr.mxu0 0.0
    %1633 = vmatpush2.msra.mxu0 0.0
    %1634 = vmatprep.subr.mxu0 0.0
    %1635 = vmatpush2.msra.mxu0 0.0
    %1636 = vmatprep.subr.mxu0 0.0
    %1637 = vmatpush2.msra.mxu0 0.0
    %1638 = vmatprep.subr.mxu0 0.0
    %1639 = vmatpush2.msra.mxu0 0.0
    %1640 = vmatprep.subr.mxu0 0.0
    %1641 = vmatpush2.msra.mxu0 0.0
    %1642 = vmatprep.mubr.f32.mxu0 0.0
    %1643 = vmatmul.mubr.f32.gmra.mxu0 %v1573
    %v1644 = vpop.f32.mrf.mxu0
    %v1645 = vadd.f32 %v1570, %v1644
    %v1646 = vpop.f32.mrf.mxu0
    %1647 = vmatprep.mubr.f32.mxu0 0.0
    %1648 = vmatmul.mubr.f32.gmra.mxu0 %v1576
    %v1649 = vpop.f32.mrf.mxu0
    %v1650 = vadd.f32 %v1570, %v1649
    %v1651 = vpop.f32.mrf.mxu0
    %1652 = vdwg.mxu0
    %v1653 = vadd.f32 %v45, %v1645
    %v1654 = vadd.f32 %v46, %v1650
    %v1655 = vld [vmem:[%s7] sm:$0x1]
    %v1656 = vld [vmem:[%s8] sm:$0x1]
    %v1657 = vsel %vm49, %v1653, 0.0
    %1658 = vadd.xlane.f32.xlu0 %v1657
    %v1659 = vpop.xlane.xlu0 %1658
    %v1660 = vsel %vm49, %v1654, 0.0
    %1661 = vadd.xlane.f32.xlu0 %v1660
    %v1662 = vpop.xlane.xlu0 %1661
    %v1663 = vmul.f32 %v1653, %v1653
    %v1664 = vmul.f32 %v1654, %v1654
    %v1665 = vsel %vm49, %v1663, 0.0
    %1666 = vadd.xlane.f32.xlu0 %v1665
    %v1667 = vpop.xlane.xlu0 %1666
    %v1668 = vsel %vm49, %v1664, 0.0
    %1669 = vadd.xlane.f32.xlu0 %v1668
    %v1670 = vpop.xlane.xlu0 %1669
    %v1671 = vmul.f32 %v1659, 0.03125
    %v1672 = vmul.f32 %v1662, 0.03125
    %v1673 = vmul.f32 %v1667, 0.03125
    %v1674 = vmul.f32 %v1670, 0.03125
    %v1675 = vmul.f32 %v1671, %v1671
    %v1676 = vmul.f32 %v1672, %v1672
    %v1677 = vsub.f32 %v1673, %v1675
    %v1678 = vsub.f32 %v1674, %v1676
    %v1679 = vsub.f32 %v1653, %v1671
    %v1680 = vsub.f32 %v1654, %v1672
    %v1681 = vadd.f32 %v1677, 1e-06
    %v1682 = vadd.f32 %v1678, 1e-06
    %v1683 = vrsqrt.pop %v1681
    %v1684 = vrsqrt.pop %v1682
    %v1685 = vmul.f32 %v1679, %v1683
    %v1686 = vmul.f32 %v1680, %v1684
    %v1688 = vlaneseq
    %v1689 = vshrl.u32 %v1688, 7
    %v1690 = vsub.s32 0, %v1689
    %v1691 = vrot.slane %v1655, %v1690
    %v1693 = vmul.f32 %v1685, %v1691
    %v1694 = vmul.f32 %v1686, %v1691
    %v1696 = vlaneseq
    %v1697 = vshrl.u32 %v1696, 7
    %v1698 = vsub.s32 0, %v1697
    %v1699 = vrot.slane %v1656, %v1698
    %v1701 = vadd.f32 %v1693, %v1699
    %v1702 = vadd.f32 %v1694, %v1699
    %v1703 = vld [vmem:[%s9] sm:$0xff]
    %v1704 = vld [vmem:[%s9 + $0x8] sm:$0xff]
    %v1705 = vld [vmem:[%s9 + $0x10] sm:$0xff]
    %v1706 = vld [vmem:[%s9 + $0x18] sm:$0xff]
    %v1707 = vld [vmem:[%s10] sm:$0x1]
    %v1709 = vlaneseq
    %v1710 = vshrl.u32 %v1709, 7
    %v1711 = vsub.s32 0, %v1710
    %v1712 = vrot.slane %v1707, %v1711
    %v1715 = vsel %vm49, %v1701, 0
    %v1718 = vsel %vm49, %v1702, 0
    %1720 = vmatprep.subr.mxu0 0.0
    %1721 = vmatpush1.msra.mxu0 0.0
    %1722 = vmatprep.subr.mxu0 0.0
    %1723 = vmatpush1.msra.mxu0 0.0
    %1724 = vmatprep.subr.mxu0 0.0
    %1725 = vmatpush1.msra.mxu0 0.0
    %1726 = vmatprep.subr.mxu0 0.0
    %1727 = vmatpush1.msra.mxu0 0.0
    %1728 = vmatprep.subr.mxu0 0.0
    %1729 = vmatpush1.msra.mxu0 0.0
    %1730 = vmatprep.subr.mxu0 0.0
    %1731 = vmatpush1.msra.mxu0 0.0
    %1732 = vmatprep.subr.mxu0 0.0
    %1733 = vmatpush1.msra.mxu0 0.0
    %1734 = vmatprep.subr.mxu0 0.0
    %1735 = vmatpush1.msra.mxu0 0.0
    %1736 = vmatprep.subr.mxu0 0.0
    %1737 = vmatpush1.msra.mxu0 0.0
    %1738 = vmatprep.subr.mxu0 0.0
    %1739 = vmatpush1.msra.mxu0 0.0
    %1740 = vmatprep.subr.mxu0 0.0
    %1741 = vmatpush1.msra.mxu0 0.0
    %1742 = vmatprep.subr.mxu0 0.0
    %1743 = vmatpush1.msra.mxu0 0.0
    %1744 = vmatprep.subr.mxu0 0.0
    %1745 = vmatpush1.msra.mxu0 %v1706
    %1746 = vmatprep.subr.mxu0 0.0
    %1747 = vmatpush1.msra.mxu0 %v1705
    %1748 = vmatprep.subr.mxu0 0.0
    %1749 = vmatpush1.msra.mxu0 %v1704
    %1750 = vmatprep.subr.mxu0 0.0
    %1751 = vmatpush1.msra.mxu0 %v1703
    %1752 = vmatprep.subr.mxu0 0.0
    %1753 = vmatpush2.msra.mxu0 0.0
    %1754 = vmatprep.subr.mxu0 0.0
    %1755 = vmatpush2.msra.mxu0 0.0
    %1756 = vmatprep.subr.mxu0 0.0
    %1757 = vmatpush2.msra.mxu0 0.0
    %1758 = vmatprep.subr.mxu0 0.0
    %1759 = vmatpush2.msra.mxu0 0.0
    %1760 = vmatprep.subr.mxu0 0.0
    %1761 = vmatpush2.msra.mxu0 0.0
    %1762 = vmatprep.subr.mxu0 0.0
    %1763 = vmatpush2.msra.mxu0 0.0
    %1764 = vmatprep.subr.mxu0 0.0
    %1765 = vmatpush2.msra.mxu0 0.0
    %1766 = vmatprep.subr.mxu0 0.0
    %1767 = vmatpush2.msra.mxu0 0.0
    %1768 = vmatprep.subr.mxu0 0.0
    %1769 = vmatpush2.msra.mxu0 0.0
    %1770 = vmatprep.subr.mxu0 0.0
    %1771 = vmatpush2.msra.mxu0 0.0
    %1772 = vmatprep.subr.mxu0 0.0
    %1773 = vmatpush2.msra.mxu0 0.0
    %1774 = vmatprep.subr.mxu0 0.0
    %1775 = vmatpush2.msra.mxu0 0.0
    %1776 = vmatprep.subr.mxu0 0.0
    %1777 = vmatpush2.msra.mxu0 0.0
    %1778 = vmatprep.subr.mxu0 0.0
    %1779 = vmatpush2.msra.mxu0 0.0
    %1780 = vmatprep.subr.mxu0 0.0
    %1781 = vmatpush2.msra.mxu0 0.0
    %1782 = vmatprep.subr.mxu0 0.0
    %1783 = vmatpush2.msra.mxu0 0.0
    %1784 = vmatprep.mubr.f32.mxu0 0.0
    %1785 = vmatmul.mubr.f32.gmra.mxu0 %v1715
    %v1786 = vpop.f32.mrf.mxu0
    %v1787 = vadd.f32 %v1712, %v1786
    %v1788 = vpop.f32.mrf.mxu0
    %1789 = vmatprep.mubr.f32.mxu0 0.0
    %1790 = vmatmul.mubr.f32.gmra.mxu0 %v1718
    %v1791 = vpop.f32.mrf.mxu0
    %v1792 = vadd.f32 %v1712, %v1791
    %v1793 = vpop.f32.mrf.mxu0
    %1794 = vdwg.mxu0
    %v1795 = vmul.f32 %v1787, 0.5
    %v1796 = vmul.f32 %v1792, 0.5
    %v1797 = vmul.f32 %v1787, 0.70710677
    %v1798 = vmul.f32 %v1792, 0.70710677
    %v1799 = verf.f32.pop %v1797
    %v1800 = verf.f32.pop %v1798
    %v1801 = vadd.f32 %v1799, 1.0
    %v1802 = vadd.f32 %v1800, 1.0
    %v1803 = vmul.f32 %v1795, %v1801
    %v1804 = vmul.f32 %v1796, %v1802
    %v1805 = vld [vmem:[%s11] sm:$0xff]
    %v1806 = vld [vmem:[%s11 + $0x8] sm:$0xff]
    %v1807 = vld [vmem:[%s11 + $0x10] sm:$0xff]
    %v1808 = vld [vmem:[%s11 + $0x18] sm:$0xff]
    %v1809 = vld [vmem:[%s11 + $0x20] sm:$0xff]
    %v1810 = vld [vmem:[%s11 + $0x28] sm:$0xff]
    %v1811 = vld [vmem:[%s11 + $0x30] sm:$0xff]
    %v1812 = vld [vmem:[%s11 + $0x38] sm:$0xff]
    %v1813 = vld [vmem:[%s11 + $0x40] sm:$0xff]
    %v1814 = vld [vmem:[%s11 + $0x48] sm:$0xff]
    %v1815 = vld [vmem:[%s11 + $0x50] sm:$0xff]
    %v1816 = vld [vmem:[%s11 + $0x58] sm:$0xff]
    %v1817 = vld [vmem:[%s11 + $0x60] sm:$0xff]
    %v1818 = vld [vmem:[%s11 + $0x68] sm:$0xff]
    %v1819 = vld [vmem:[%s11 + $0x70] sm:$0xff]
    %v1820 = vld [vmem:[%s11 + $0x78] sm:$0xff]
    %v1821 = vld [vmem:[%s12] sm:$0x1]
    %v1823 = vlaneseq
    %v1824 = vshrl.u32 %v1823, 7
    %v1825 = vsub.s32 0, %v1824
    %v1826 = vrot.slane %v1821, %v1825
    %1828 = vmatprep.subr.mxu0 0.0
    %1829 = vmatpush1.msra.mxu0 %v1820
    %1830 = vmatprep.subr.mxu0 0.0
    %1831 = vmatpush1.msra.mxu0 %v1819
    %1832 = vmatprep.subr.mxu0 0.0
    %1833 = vmatpush1.msra.mxu0 %v1818
    %1834 = vmatprep.subr.mxu0 0.0
    %1835 = vmatpush1.msra.mxu0 %v1817
    %1836 = vmatprep.subr.mxu0 0.0
    %1837 = vmatpush1.msra.mxu0 %v1816
    %1838 = vmatprep.subr.mxu0 0.0
    %1839 = vmatpush1.msra.mxu0 %v1815
    %1840 = vmatprep.subr.mxu0 0.0
    %1841 = vmatpush1.msra.mxu0 %v1814
    %1842 = vmatprep.subr.mxu0 0.0
    %1843 = vmatpush1.msra.mxu0 %v1813
    %1844 = vmatprep.subr.mxu0 0.0
    %1845 = vmatpush1.msra.mxu0 %v1812
    %1846 = vmatprep.subr.mxu0 0.0
    %1847 = vmatpush1.msra.mxu0 %v1811
    %1848 = vmatprep.subr.mxu0 0.0
    %1849 = vmatpush1.msra.mxu0 %v1810
    %1850 = vmatprep.subr.mxu0 0.0
    %1851 = vmatpush1.msra.mxu0 %v1809
    %1852 = vmatprep.subr.mxu0 0.0
    %1853 = vmatpush1.msra.mxu0 %v1808
    %1854 = vmatprep.subr.mxu0 0.0
    %1855 = vmatpush1.msra.mxu0 %v1807
    %1856 = vmatprep.subr.mxu0 0.0
    %1857 = vmatpush1.msra.mxu0 %v1806
    %1858 = vmatprep.subr.mxu0 0.0
    %1859 = vmatpush1.msra.mxu0 %v1805
    %1860 = vmatprep.subr.mxu0 0.0
    %1861 = vmatpush2.msra.mxu0 0.0
    %1862 = vmatprep.subr.mxu0 0.0
    %1863 = vmatpush2.msra.mxu0 0.0
    %1864 = vmatprep.subr.mxu0 0.0
    %1865 = vmatpush2.msra.mxu0 0.0
    %1866 = vmatprep.subr.mxu0 0.0
    %1867 = vmatpush2.msra.mxu0 0.0
    %1868 = vmatprep.subr.mxu0 0.0
    %1869 = vmatpush2.msra.mxu0 0.0
    %1870 = vmatprep.subr.mxu0 0.0
    %1871 = vmatpush2.msra.mxu0 0.0
    %1872 = vmatprep.subr.mxu0 0.0
    %1873 = vmatpush2.msra.mxu0 0.0
    %1874 = vmatprep.subr.mxu0 0.0
    %1875 = vmatpush2.msra.mxu0 0.0
    %1876 = vmatprep.subr.mxu0 0.0
    %1877 = vmatpush2.msra.mxu0 0.0
    %1878 = vmatprep.subr.mxu0 0.0
    %1879 = vmatpush2.msra.mxu0 0.0
    %1880 = vmatprep.subr.mxu0 0.0
    %1881 = vmatpush2.msra.mxu0 0.0
    %1882 = vmatprep.subr.mxu0 0.0
    %1883 = vmatpush2.msra.mxu0 0.0
    %1884 = vmatprep.subr.mxu0 0.0
    %1885 = vmatpush2.msra.mxu0 0.0
    %1886 = vmatprep.subr.mxu0 0.0
    %1887 = vmatpush2.msra.mxu0 0.0
    %1888 = vmatprep.subr.mxu0 0.0
    %1889 = vmatpush2.msra.mxu0 0.0
    %1890 = vmatprep.subr.mxu0 0.0
    %1891 = vmatpush2.msra.mxu0 0.0
    %1892 = vmatprep.mubr.f32.mxu0 0.0
    %1893 = vmatmul.mubr.f32.gmra.mxu0 %v1803
    %v1894 = vpop.f32.mrf.mxu0
    %v1895 = vadd.f32 %v1826, %v1894
    %v1896 = vpop.f32.mrf.mxu0
    %1897 = vmatprep.mubr.f32.mxu0 0.0
    %1898 = vmatmul.mubr.f32.gmra.mxu0 %v1804
    %v1899 = vpop.f32.mrf.mxu0
    %v1900 = vadd.f32 %v1826, %v1899
    %v1901 = vpop.f32.mrf.mxu0
    %1902 = vdwg.mxu0
    %v1903 = vadd.f32 %v1653, %v1895
    %v1904 = vadd.f32 %v1654, %v1900
    %1905 = vst.msk [vmem:[#allocation2] sm:$0xff] %vm49, %v1903
    %1906 = vst.msk [vmem:[#allocation2 + $0x8] sm:$0xff] %vm49, %v1904
    // Predicated region
    $region54: #{tpu_custom_call.1} parent=1 // pred_check
      _
    $region55: #{tpu_custom_call.1} parent=1 // pred_check_branch
      %1908 = sbr.rel (0) target = $region57
    $region56: #{tpu_custom_call.1} parent=1 // pred_region
      %s1910 = ssub.s32 256, 256
      %1911 = vsyncadd [#allocation3], %s1910
      %s1912 = sshll.u32 [#allocation2], 4
      %s1913 = int_to_ptr.vmem [resolvable:$true] %s1912
      %1918 = dma.vmem_to_hbm [thread:$0]  %s1913, 256, %s13, [#allocation3], 128, 128, 8
    $region57: #{tpu_custom_call.1} parent=1 // pred_fallthru
      _
    // Predicated region
    $region58: #{tpu_custom_call.1} parent=1 // pred_check
      _
    $region59: #{tpu_custom_call.1} parent=1 // pred_check_branch
      %1920 = sbr.rel (0) target = $region61
    $region60: #{tpu_custom_call.1} parent=1 // pred_region
      %1921 = dma.done [#allocation3], 256
    $region61: #{tpu_custom_call.1} parent=1 // pred_fallthru
      _
    %1922 = vsyncpa [#allocation3], 1

</llo_original>
